<compile_context>
chip_gen: v7x
topology: tpu7x:2x2x1
jax: 0.10.0
libtpu: 0.0.40
codegen_flags: <defaults>
</compile_context>

<pallas_src>
import jax
import jax.numpy as jnp
from jax.experimental import pallas as pl
from jax.experimental.pallas import tpu as pltpu

NEG_SLOPE = 0.01       # nn.LeakyReLU default negative_slope
N_HIDDEN_LAYERS = 7    # hidden->hidden Linear layers (besides first + last)


def _leaky_relu(h):
    return jnp.where(h > 0, h, NEG_SLOPE * h)


def mlp_kernel(x_ref, w0_ref, b0_ref, wh_ref, bh_ref, wl_ref, bl_ref, out_ref):
    """Full 9-layer MLP on one batch tile, feature-major (batch on lanes).

    x_ref:   (n_init, tile_b)        input tile, batch on the lane axis
    w0_ref:  (hidden, n_init)        first Linear, PyTorch [out, in] layout
    b0_ref:  (hidden, 1)
    wh_ref:  (7, hidden, hidden)     stacked hidden Linears
    bh_ref:  (7, hidden, 1)
    wl_ref:  (1, hidden)             final Linear
    bl_ref:  (1, 1)
    out_ref: (1, tile_b)             lane-dense output tile
    """
    h = x_ref[...].astype(jnp.float32)                        # (n_init, tile_b)

    # Layer 0: Linear(n_init -> hidden) + LeakyReLU
    h = jnp.dot(w0_ref[...], h, preferred_element_type=jnp.float32)
    h = _leaky_relu(h + b0_ref[...])                          # (hidden, tile_b)

    # Layers 1..7: Linear(hidden -> hidden) + LeakyReLU (statically unrolled)
    for i in range(N_HIDDEN_LAYERS):
        h = jnp.dot(wh_ref[i], h, preferred_element_type=jnp.float32)
        h = _leaky_relu(h + bh_ref[i])                        # (hidden, tile_b)

    # Final layer: Linear(hidden -> 1), no activation.  In this layout it is a
    # (1, hidden) @ (hidden, tile_b) MXU op with a lane-dense (1, tile_b)
    # result tile.
    out = jnp.dot(wl_ref[...], h, preferred_element_type=jnp.float32)
    out_ref[...] = (out + bl_ref[...]).astype(out_ref.dtype)


def model_deep_forward(x, params, *, tile_b=None):
    """x: [B, n_init] float32.  params: (w0, b0, wh, bh, wl, bl).

    Returns [B, 1] float32, matching ModelDeep.forward (modulo f64 -> f32).
    """
    w0, b0, wh, bh, wl, bl = params
    B, n_init = x.shape
    hidden = w0.shape[0]
    del hidden  # weights are passed whole; only used for documentation

    if tile_b is None:
        # Two parallel grid steps when the batch is big/aligned enough (feeds
        # both v7x TensorCores); otherwise a single step (best on v5e/v6e).
        tile_b = B // 2 if (B % 256 == 0) else B
    assert B % tile_b == 0, "batch must be divisible by the batch tile"
    # TODO(synk): ragged batches must be padded by the caller (pad rows, then
    # drop the corresponding outputs).

    # Batch-on-lanes layout: transpose so features sit on the sublane axis and
    # the (large) batch dimension sits on the 128-wide lane axis.
    x_t = jnp.asarray(x, jnp.float32).T                       # (n_init, B)

    def const_spec(shape):
        # Whole (tiny) parameter array resident every grid step.
        return pl.BlockSpec(shape, lambda i, _n=len(shape): (0,) * _n)

    x_spec = pl.BlockSpec((n_init, tile_b), lambda i: (0, i))
    out_spec = pl.BlockSpec((1, tile_b), lambda i: (0, i))

    out_t = pl.pallas_call(
        mlp_kernel,
        out_shape=jax.ShapeDtypeStruct((1, B), jnp.float32),
        grid_spec=pltpu.PrefetchScalarGridSpec(
            num_scalar_prefetch=0,
            grid=(B // tile_b,),
            in_specs=[
                x_spec,
                const_spec(w0.shape),   # (hidden, n_init)
                const_spec(b0.shape),   # (hidden, 1)
                const_spec(wh.shape),   # (7, hidden, hidden)
                const_spec(bh.shape),   # (7, hidden, 1)
                const_spec(wl.shape),   # (1, hidden)
                const_spec(bl.shape),   # (1, 1)
            ],
            out_specs=out_spec,
        ),
        compiler_params=pltpu.CompilerParams(
            dimension_semantics=("parallel",)),
    )(x_t, w0, b0, wh, bh, wl, bl)

    return out_t.T                                            # (B, 1)


def init_params(key, n_init, hidden_dim):
    """Deterministic init mimicking nn.Linear's U(-1/sqrt(in), 1/sqrt(in)).

    Weights kept in PyTorch [out, in] layout; biases as [out, 1] columns so
    they broadcast over the lane (batch) axis inside the kernel.
    """
    def linear(k, d_in, d_out):
        kw, kb = jax.random.split(k)
        bound = 1.0 / jnp.sqrt(jnp.float32(d_in))
        w = jax.random.uniform(kw, (d_out, d_in), jnp.float32,
                               minval=-bound, maxval=bound)
        b = jax.random.uniform(kb, (d_out, 1), jnp.float32,
                               minval=-bound, maxval=bound)
        return w, b

    keys = jax.random.split(key, 2 + N_HIDDEN_LAYERS)
    w0, b0 = linear(keys[0], n_init, hidden_dim)
    whs, bhs = [], []
    for i in range(N_HIDDEN_LAYERS):
        w, b = linear(keys[1 + i], hidden_dim, hidden_dim)
        whs.append(w)
        bhs.append(b)
    wh = jnp.stack(whs)            # (7, hidden, hidden)
    bh = jnp.stack(bhs)            # (7, hidden, 1)
    wl, bl = linear(keys[-1], hidden_dim, 1)
    return (w0, b0, wh, bh, wl, bl)


def reference_forward(x, params):
    """Pure-JAX reference of the same MLP (batch-major, for sanity check)."""
    w0, b0, wh, bh, wl, bl = params
    h = x.astype(jnp.float32)
    h = _leaky_relu(h @ w0.T + b0[:, 0])
    for i in range(N_HIDDEN_LAYERS):
        h = _leaky_relu(h @ wh[i].T + bh[i, :, 0])
    return h @ wl.T + bl[:, 0]


if __name__ == "__main__":
    key = jax.random.PRNGKey(0)
    n_init, hidden_dim = 16, 32
    batch = 256  # multiple of 256 -> lane-dense tiles; 2 parallel grid steps

    kx, kp = jax.random.split(key)
    x = jax.random.normal(kx, (batch, n_init), jnp.float32)
    params = init_params(kp, n_init, hidden_dim)

    out = model_deep_forward(x, params)
    out = jax.block_until_ready(out)

    ref = reference_forward(x, params)
    assert out.shape == (batch, 1)
    assert jnp.allclose(out, ref, atol=1e-4, rtol=1e-4), "mismatch vs reference"

    print("KERNEL_OK")
</pallas_src>

<mosaic_0001>
module attributes {stable_mosaic.version = 11 : i64} {
  func.func @mlp_kernel(%arg0: i32, %arg1: memref<16x128xf32, #tpu.memory_space<vmem>>, %arg2: memref<32x16xf32, #tpu.memory_space<vmem>>, %arg3: memref<32x1xf32, #tpu.memory_space<vmem>>, %arg4: memref<7x32x32xf32, #tpu.memory_space<vmem>>, %arg5: memref<7x32x1xf32, #tpu.memory_space<vmem>>, %arg6: memref<1x32xf32, #tpu.memory_space<vmem>>, %arg7: memref<1x1xf32, #tpu.memory_space<vmem>>, %arg8: memref<1x128xf32, #tpu.memory_space<vmem>>) attributes {dimension_semantics = [#tpu.dimension_semantics<parallel>], iteration_bounds = array<i64: 2>, scalar_prefetch = 0 : i64, scratch_operands = 0 : i64, tpu.core_type = #tpu.core_type<tc>, window_params = [{transform_indices = @transform_0, window_bounds = array<i64: 16, 128>}, {pipeline_mode = #tpu.pipeline_mode<synchronous>, transform_indices = @transform_1, window_bounds = array<i64: 32, 16>}, {pipeline_mode = #tpu.pipeline_mode<synchronous>, transform_indices = @transform_2, window_bounds = array<i64: 32, 1>}, {pipeline_mode = #tpu.pipeline_mode<synchronous>, transform_indices = @transform_3, window_bounds = array<i64: 7, 32, 32>}, {pipeline_mode = #tpu.pipeline_mode<synchronous>, transform_indices = @transform_4, window_bounds = array<i64: 7, 32, 1>}, {pipeline_mode = #tpu.pipeline_mode<synchronous>, transform_indices = @transform_5, window_bounds = array<i64: 1, 32>}, {pipeline_mode = #tpu.pipeline_mode<synchronous>, transform_indices = @transform_6, window_bounds = array<i64: 1, 1>}, {transform_indices = @transform_7, window_bounds = array<i64: 1, 128>}]} {
    %c0 = arith.constant 0 : index
    %c0_0 = arith.constant 0 : index
    %0 = vector.load %arg1[%c0, %c0_0] : memref<16x128xf32, #tpu.memory_space<vmem>>, vector<16x128xf32>
    %c0_1 = arith.constant 0 : index
    %c0_2 = arith.constant 0 : index
    %1 = vector.load %arg2[%c0_1, %c0_2] : memref<32x16xf32, #tpu.memory_space<vmem>>, vector<32x16xf32>
    %cst = arith.constant dense<0.000000e+00> : vector<32x128xf32>
    %2 = tpu.matmul %1, %0, %cst {dimension_numbers = #tpu.dot_dimension_numbers<[1], [0], [0], [1], [0, 0, 1, 1], [], []>} : vector<32x16xf32>, vector<16x128xf32>, vector<32x128xf32> -> vector<32x128xf32>
    %c0_3 = arith.constant 0 : index
    %c0_4 = arith.constant 0 : index
    %3 = vector.load %arg3[%c0_3, %c0_4] : memref<32x1xf32, #tpu.memory_space<vmem>>, vector<32x1xf32>
    %4 = vector.broadcast %3 : vector<32x1xf32> to vector<32x128xf32>
    %5 = arith.addf %2, %4 : vector<32x128xf32>
    %cst_5 = arith.constant 0.000000e+00 : f32
    %6 = vector.broadcast %cst_5 : f32 to vector<32x128xf32>
    %7 = arith.cmpf ogt, %5, %6 : vector<32x128xf32>
    %cst_6 = arith.constant 0.00999999977 : f32
    %8 = vector.broadcast %cst_6 : f32 to vector<32x128xf32>
    %9 = arith.mulf %8, %5 : vector<32x128xf32>
    %10 = arith.select %7, %5, %9 : vector<32x128xi1>, vector<32x128xf32>
    %c0_7 = arith.constant 0 : index
    %c0_8 = arith.constant 0 : index
    %c0_9 = arith.constant 0 : index
    %11 = vector.load %arg4[%c0_7, %c0_8, %c0_9] : memref<7x32x32xf32, #tpu.memory_space<vmem>>, vector<1x32x32xf32>
    %12 = vector.shape_cast %11 : vector<1x32x32xf32> to vector<32x32xf32>
    %cst_10 = arith.constant dense<0.000000e+00> : vector<32x128xf32>
    %13 = tpu.matmul %12, %10, %cst_10 {dimension_numbers = #tpu.dot_dimension_numbers<[1], [0], [0], [1], [0, 0, 1, 1], [], []>} : vector<32x32xf32>, vector<32x128xf32>, vector<32x128xf32> -> vector<32x128xf32>
    %c0_11 = arith.constant 0 : index
    %c0_12 = arith.constant 0 : index
    %c0_13 = arith.constant 0 : index
    %14 = vector.load %arg5[%c0_11, %c0_12, %c0_13] : memref<7x32x1xf32, #tpu.memory_space<vmem>>, vector<1x32x1xf32>
    %15 = vector.shape_cast %14 : vector<1x32x1xf32> to vector<32x1xf32>
    %16 = vector.broadcast %15 : vector<32x1xf32> to vector<32x128xf32>
    %17 = arith.addf %13, %16 : vector<32x128xf32>
    %cst_14 = arith.constant 0.000000e+00 : f32
    %18 = vector.broadcast %cst_14 : f32 to vector<32x128xf32>
    %19 = arith.cmpf ogt, %17, %18 : vector<32x128xf32>
    %cst_15 = arith.constant 0.00999999977 : f32
    %20 = vector.broadcast %cst_15 : f32 to vector<32x128xf32>
    %21 = arith.mulf %20, %17 : vector<32x128xf32>
    %22 = arith.select %19, %17, %21 : vector<32x128xi1>, vector<32x128xf32>
    %c1 = arith.constant 1 : index
    %c0_16 = arith.constant 0 : index
    %c0_17 = arith.constant 0 : index
    %23 = vector.load %arg4[%c1, %c0_16, %c0_17] : memref<7x32x32xf32, #tpu.memory_space<vmem>>, vector<1x32x32xf32>
    %24 = vector.shape_cast %23 : vector<1x32x32xf32> to vector<32x32xf32>
    %cst_18 = arith.constant dense<0.000000e+00> : vector<32x128xf32>
    %25 = tpu.matmul %24, %22, %cst_18 {dimension_numbers = #tpu.dot_dimension_numbers<[1], [0], [0], [1], [0, 0, 1, 1], [], []>} : vector<32x32xf32>, vector<32x128xf32>, vector<32x128xf32> -> vector<32x128xf32>
    %c1_19 = arith.constant 1 : index
    %c0_20 = arith.constant 0 : index
    %c0_21 = arith.constant 0 : index
    %26 = vector.load %arg5[%c1_19, %c0_20, %c0_21] : memref<7x32x1xf32, #tpu.memory_space<vmem>>, vector<1x32x1xf32>
    %27 = vector.shape_cast %26 : vector<1x32x1xf32> to vector<32x1xf32>
    %28 = vector.broadcast %27 : vector<32x1xf32> to vector<32x128xf32>
    %29 = arith.addf %25, %28 : vector<32x128xf32>
    %cst_22 = arith.constant 0.000000e+00 : f32
    %30 = vector.broadcast %cst_22 : f32 to vector<32x128xf32>
    %31 = arith.cmpf ogt, %29, %30 : vector<32x128xf32>
    %cst_23 = arith.constant 0.00999999977 : f32
    %32 = vector.broadcast %cst_23 : f32 to vector<32x128xf32>
    %33 = arith.mulf %32, %29 : vector<32x128xf32>
    %34 = arith.select %31, %29, %33 : vector<32x128xi1>, vector<32x128xf32>
    %c2 = arith.constant 2 : index
    %c0_24 = arith.constant 0 : index
    %c0_25 = arith.constant 0 : index
    %35 = vector.load %arg4[%c2, %c0_24, %c0_25] : memref<7x32x32xf32, #tpu.memory_space<vmem>>, vector<1x32x32xf32>
    %36 = vector.shape_cast %35 : vector<1x32x32xf32> to vector<32x32xf32>
    %cst_26 = arith.constant dense<0.000000e+00> : vector<32x128xf32>
    %37 = tpu.matmul %36, %34, %cst_26 {dimension_numbers = #tpu.dot_dimension_numbers<[1], [0], [0], [1], [0, 0, 1, 1], [], []>} : vector<32x32xf32>, vector<32x128xf32>, vector<32x128xf32> -> vector<32x128xf32>
    %c2_27 = arith.constant 2 : index
    %c0_28 = arith.constant 0 : index
    %c0_29 = arith.constant 0 : index
    %38 = vector.load %arg5[%c2_27, %c0_28, %c0_29] : memref<7x32x1xf32, #tpu.memory_space<vmem>>, vector<1x32x1xf32>
    %39 = vector.shape_cast %38 : vector<1x32x1xf32> to vector<32x1xf32>
    %40 = vector.broadcast %39 : vector<32x1xf32> to vector<32x128xf32>
    %41 = arith.addf %37, %40 : vector<32x128xf32>
    %cst_30 = arith.constant 0.000000e+00 : f32
    %42 = vector.broadcast %cst_30 : f32 to vector<32x128xf32>
    %43 = arith.cmpf ogt, %41, %42 : vector<32x128xf32>
    %cst_31 = arith.constant 0.00999999977 : f32
    %44 = vector.broadcast %cst_31 : f32 to vector<32x128xf32>
    %45 = arith.mulf %44, %41 : vector<32x128xf32>
    %46 = arith.select %43, %41, %45 : vector<32x128xi1>, vector<32x128xf32>
    %c3 = arith.constant 3 : index
    %c0_32 = arith.constant 0 : index
    %c0_33 = arith.constant 0 : index
    %47 = vector.load %arg4[%c3, %c0_32, %c0_33] : memref<7x32x32xf32, #tpu.memory_space<vmem>>, vector<1x32x32xf32>
    %48 = vector.shape_cast %47 : vector<1x32x32xf32> to vector<32x32xf32>
    %cst_34 = arith.constant dense<0.000000e+00> : vector<32x128xf32>
    %49 = tpu.matmul %48, %46, %cst_34 {dimension_numbers = #tpu.dot_dimension_numbers<[1], [0], [0], [1], [0, 0, 1, 1], [], []>} : vector<32x32xf32>, vector<32x128xf32>, vector<32x128xf32> -> vector<32x128xf32>
    %c3_35 = arith.constant 3 : index
    %c0_36 = arith.constant 0 : index
    %c0_37 = arith.constant 0 : index
    %50 = vector.load %arg5[%c3_35, %c0_36, %c0_37] : memref<7x32x1xf32, #tpu.memory_space<vmem>>, vector<1x32x1xf32>
    %51 = vector.shape_cast %50 : vector<1x32x1xf32> to vector<32x1xf32>
    %52 = vector.broadcast %51 : vector<32x1xf32> to vector<32x128xf32>
    %53 = arith.addf %49, %52 : vector<32x128xf32>
    %cst_38 = arith.constant 0.000000e+00 : f32
    %54 = vector.broadcast %cst_38 : f32 to vector<32x128xf32>
    %55 = arith.cmpf ogt, %53, %54 : vector<32x128xf32>
    %cst_39 = arith.constant 0.00999999977 : f32
    %56 = vector.broadcast %cst_39 : f32 to vector<32x128xf32>
    %57 = arith.mulf %56, %53 : vector<32x128xf32>
    %58 = arith.select %55, %53, %57 : vector<32x128xi1>, vector<32x128xf32>
    %c4 = arith.constant 4 : index
    %c0_40 = arith.constant 0 : index
    %c0_41 = arith.constant 0 : index
    %59 = vector.load %arg4[%c4, %c0_40, %c0_41] : memref<7x32x32xf32, #tpu.memory_space<vmem>>, vector<1x32x32xf32>
    %60 = vector.shape_cast %59 : vector<1x32x32xf32> to vector<32x32xf32>
    %cst_42 = arith.constant dense<0.000000e+00> : vector<32x128xf32>
    %61 = tpu.matmul %60, %58, %cst_42 {dimension_numbers = #tpu.dot_dimension_numbers<[1], [0], [0], [1], [0, 0, 1, 1], [], []>} : vector<32x32xf32>, vector<32x128xf32>, vector<32x128xf32> -> vector<32x128xf32>
    %c4_43 = arith.constant 4 : index
    %c0_44 = arith.constant 0 : index
    %c0_45 = arith.constant 0 : index
    %62 = vector.load %arg5[%c4_43, %c0_44, %c0_45] : memref<7x32x1xf32, #tpu.memory_space<vmem>>, vector<1x32x1xf32>
    %63 = vector.shape_cast %62 : vector<1x32x1xf32> to vector<32x1xf32>
    %64 = vector.broadcast %63 : vector<32x1xf32> to vector<32x128xf32>
    %65 = arith.addf %61, %64 : vector<32x128xf32>
    %cst_46 = arith.constant 0.000000e+00 : f32
    %66 = vector.broadcast %cst_46 : f32 to vector<32x128xf32>
    %67 = arith.cmpf ogt, %65, %66 : vector<32x128xf32>
    %cst_47 = arith.constant 0.00999999977 : f32
    %68 = vector.broadcast %cst_47 : f32 to vector<32x128xf32>
    %69 = arith.mulf %68, %65 : vector<32x128xf32>
    %70 = arith.select %67, %65, %69 : vector<32x128xi1>, vector<32x128xf32>
    %c5 = arith.constant 5 : index
    %c0_48 = arith.constant 0 : index
    %c0_49 = arith.constant 0 : index
    %71 = vector.load %arg4[%c5, %c0_48, %c0_49] : memref<7x32x32xf32, #tpu.memory_space<vmem>>, vector<1x32x32xf32>
    %72 = vector.shape_cast %71 : vector<1x32x32xf32> to vector<32x32xf32>
    %cst_50 = arith.constant dense<0.000000e+00> : vector<32x128xf32>
    %73 = tpu.matmul %72, %70, %cst_50 {dimension_numbers = #tpu.dot_dimension_numbers<[1], [0], [0], [1], [0, 0, 1, 1], [], []>} : vector<32x32xf32>, vector<32x128xf32>, vector<32x128xf32> -> vector<32x128xf32>
    %c5_51 = arith.constant 5 : index
    %c0_52 = arith.constant 0 : index
    %c0_53 = arith.constant 0 : index
    %74 = vector.load %arg5[%c5_51, %c0_52, %c0_53] : memref<7x32x1xf32, #tpu.memory_space<vmem>>, vector<1x32x1xf32>
    %75 = vector.shape_cast %74 : vector<1x32x1xf32> to vector<32x1xf32>
    %76 = vector.broadcast %75 : vector<32x1xf32> to vector<32x128xf32>
    %77 = arith.addf %73, %76 : vector<32x128xf32>
    %cst_54 = arith.constant 0.000000e+00 : f32
    %78 = vector.broadcast %cst_54 : f32 to vector<32x128xf32>
    %79 = arith.cmpf ogt, %77, %78 : vector<32x128xf32>
    %cst_55 = arith.constant 0.00999999977 : f32
    %80 = vector.broadcast %cst_55 : f32 to vector<32x128xf32>
    %81 = arith.mulf %80, %77 : vector<32x128xf32>
    %82 = arith.select %79, %77, %81 : vector<32x128xi1>, vector<32x128xf32>
    %c6 = arith.constant 6 : index
    %c0_56 = arith.constant 0 : index
    %c0_57 = arith.constant 0 : index
    %83 = vector.load %arg4[%c6, %c0_56, %c0_57] : memref<7x32x32xf32, #tpu.memory_space<vmem>>, vector<1x32x32xf32>
    %84 = vector.shape_cast %83 : vector<1x32x32xf32> to vector<32x32xf32>
    %cst_58 = arith.constant dense<0.000000e+00> : vector<32x128xf32>
    %85 = tpu.matmul %84, %82, %cst_58 {dimension_numbers = #tpu.dot_dimension_numbers<[1], [0], [0], [1], [0, 0, 1, 1], [], []>} : vector<32x32xf32>, vector<32x128xf32>, vector<32x128xf32> -> vector<32x128xf32>
    %c6_59 = arith.constant 6 : index
    %c0_60 = arith.constant 0 : index
    %c0_61 = arith.constant 0 : index
    %86 = vector.load %arg5[%c6_59, %c0_60, %c0_61] : memref<7x32x1xf32, #tpu.memory_space<vmem>>, vector<1x32x1xf32>
    %87 = vector.shape_cast %86 : vector<1x32x1xf32> to vector<32x1xf32>
    %88 = vector.broadcast %87 : vector<32x1xf32> to vector<32x128xf32>
    %89 = arith.addf %85, %88 : vector<32x128xf32>
    %cst_62 = arith.constant 0.000000e+00 : f32
    %90 = vector.broadcast %cst_62 : f32 to vector<32x128xf32>
    %91 = arith.cmpf ogt, %89, %90 : vector<32x128xf32>
    %cst_63 = arith.constant 0.00999999977 : f32
    %92 = vector.broadcast %cst_63 : f32 to vector<32x128xf32>
    %93 = arith.mulf %92, %89 : vector<32x128xf32>
    %94 = arith.select %91, %89, %93 : vector<32x128xi1>, vector<32x128xf32>
    %c0_64 = arith.constant 0 : index
    %c0_65 = arith.constant 0 : index
    %95 = vector.load %arg6[%c0_64, %c0_65] : memref<1x32xf32, #tpu.memory_space<vmem>>, vector<1x32xf32>
    %cst_66 = arith.constant dense<0.000000e+00> : vector<1x128xf32>
    %96 = tpu.matmul %95, %94, %cst_66 {dimension_numbers = #tpu.dot_dimension_numbers<[1], [0], [0], [1], [0, 0, 1, 1], [], []>} : vector<1x32xf32>, vector<32x128xf32>, vector<1x128xf32> -> vector<1x128xf32>
    %c0_67 = arith.constant 0 : index
    %c0_68 = arith.constant 0 : index
    %97 = vector.load %arg7[%c0_67, %c0_68] : memref<1x1xf32, #tpu.memory_space<vmem>>, vector<1x1xf32>
    %98 = vector.broadcast %97 : vector<1x1xf32> to vector<1x128xf32>
    %99 = arith.addf %96, %98 : vector<1x128xf32>
    %c0_69 = arith.constant 0 : index
    %c0_70 = arith.constant 0 : index
    %100 = vector.load %arg8[%c0_69, %c0_70] : memref<1x128xf32, #tpu.memory_space<vmem>>, vector<1x128xf32>
    tpu.vector_store %arg8[%c0_69, %c0_70], %99 {strides = array<i32>} : memref<1x128xf32, #tpu.memory_space<vmem>>, vector<1x128xf32>,
    return
  }
  func.func @transform_0(%arg0: i32) -> (i32, i32) {
    %c0_i32 = arith.constant 0 : i32
    %c0_i32_0 = arith.constant 0 : i32
    return %c0_i32, %arg0 : i32, i32
  }
  func.func @transform_1(%arg0: i32) -> (i32, i32) {
    %c0_i32 = arith.constant 0 : i32
    %c0_i32_0 = arith.constant 0 : i32
    %c0_i32_1 = arith.constant 0 : i32
    return %c0_i32, %c0_i32_0 : i32, i32
  }
  func.func @transform_2(%arg0: i32) -> (i32, i32) {
    %c0_i32 = arith.constant 0 : i32
    %c0_i32_0 = arith.constant 0 : i32
    %c0_i32_1 = arith.constant 0 : i32
    return %c0_i32, %c0_i32_0 : i32, i32
  }
  func.func @transform_3(%arg0: i32) -> (i32, i32, i32) {
    %c0_i32 = arith.constant 0 : i32
    %c0_i32_0 = arith.constant 0 : i32
    %c0_i32_1 = arith.constant 0 : i32
    %c0_i32_2 = arith.constant 0 : i32
    return %c0_i32, %c0_i32_0, %c0_i32_1 : i32, i32, i32
  }
  func.func @transform_4(%arg0: i32) -> (i32, i32, i32) {
    %c0_i32 = arith.constant 0 : i32
    %c0_i32_0 = arith.constant 0 : i32
    %c0_i32_1 = arith.constant 0 : i32
    %c0_i32_2 = arith.constant 0 : i32
    return %c0_i32, %c0_i32_0, %c0_i32_1 : i32, i32, i32
  }
  func.func @transform_5(%arg0: i32) -> (i32, i32) {
    %c0_i32 = arith.constant 0 : i32
    %c0_i32_0 = arith.constant 0 : i32
    %c0_i32_1 = arith.constant 0 : i32
    return %c0_i32, %c0_i32_0 : i32, i32
  }
  func.func @transform_6(%arg0: i32) -> (i32, i32) {
    %c0_i32 = arith.constant 0 : i32
    %c0_i32_0 = arith.constant 0 : i32
    %c0_i32_1 = arith.constant 0 : i32
    return %c0_i32, %c0_i32_0 : i32, i32
  }
  func.func @transform_7(%arg0: i32) -> (i32, i32) {
    %c0_i32 = arith.constant 0 : i32
    %c0_i32_0 = arith.constant 0 : i32
    return %c0_i32, %arg0 : i32, i32
  }
}

</mosaic_0001>

<llo_original>
// kernel: tpu_custom_call.1
$region0: #{tpu_custom_call.1}
  #allocation0 [shape = 'u32[]', space=smem, size = 0x4, offset = 0x4, fixed_abs, tag = 'smem constant byte address 0x4 - core index']
  #allocation1 [shape = 'u32[144,128]{1,0:T(1,128)}', space=vmem, size = 0x12000, scoped, tag = 'internal scratch']
  #allocation2 [shape = 'f32[1,1]{1,0:T(1,128)S(1)}', space=vmem, size = 0x200, scoped, tag = 'scoped memory for tpu_custom_call.1']
  %s0 = inlined_call_operand.vmem [shape: f32[16,256], index: 0, kind: input, shape index: {}]
  %s1 = inlined_call_operand.vmem [shape: f32[32,16], index: 1, kind: input, shape index: {}]
  %s2 = inlined_call_operand.vmem [shape: f32[32,1], index: 2, kind: input, shape index: {}]
  %s3 = inlined_call_operand.vmem [shape: f32[7,32,32], index: 3, kind: input, shape index: {}]
  %s4 = inlined_call_operand.vmem [shape: f32[7,32,1], index: 4, kind: input, shape index: {}]
  %s5 = inlined_call_operand.vmem [shape: f32[1,32], index: 5, kind: input, shape index: {}]
  %s6 = inlined_call_operand.<no memory space> [shape: f32[1,1], index: 6, kind: input, shape index: {}]
  %s7 = inlined_call_operand.hbm [shape: f32[1,256], index: 7, kind: output, shape index: {}]
  %s8 = sld [smem:[#allocation0]]
  $region99: #{tpu_custom_call.1} parent=0
    _
  %s10 = ssub.s32 1, %s8
  %s11 = scalar_select 0, %s10, %s8
  %v12 = vstv %s6
  %13 = vst [vmem:[#allocation2] sm:$0x1] %v12
  $region1: #{tpu_custom_call.1} parent=0
    #allocation3 [shape = 'u8[16384]{0}', space=vmem, size = 0x4000, scoped, tag = 'input window, operand 0']
    #allocation4 [shape = 'u8[1024]{0}', space=vmem, size = 0x400, scoped, tag = 'output window, operand 0']
    #allocation5 [shape = 's32[2]{0}', space=sflag, size = 0x8, scoped, tag = 'scoped memory for tpu_custom_call.1']
    %14 = vsyncpa [#allocation5], 0
    %s15 = scalar_lea.sflag [#allocation5], 1
    %16 = vsyncpa %s15, 0
    loop: start=0, step=1, limit=4
    $region2: #{tpu_custom_call.1} parent=1 // loop_pre_header
      _
    $region3: #{tpu_custom_call.1} parent=1 // loop_header
      %s18 = sphi 0, %s22
      %p19 = scmp.ge.s32.totalorder %s18, 4
      %s28 = sphi 0, %s30
      %s31 = sphi 0, %s28
      %s32 = sphi 0, %s31
      %s48 = sphi 0, %s32
      %s52 = sphi 0, %s52
      %s54 = sphi 0, %s52
      %s55 = sphi 0, %s54
      %s69 = sphi 0, %s55
      %s73 = sphi 0, %s73
      %s75 = sphi 0, %s73
      %s76 = sphi 0, %s75
      %s90 = sphi 0, %s76
      %s94 = sphi 0, %s94
      %s96 = sphi 0, %s94
      %s97 = sphi 0, %s96
      %s111 = sphi 0, %s97
      %s115 = sphi 0, %s115
      %s117 = sphi 0, %s115
      %s118 = sphi 0, %s117
      %s132 = sphi 0, %s118
      %s136 = sphi 0, %s136
      %s138 = sphi 0, %s136
      %s139 = sphi 0, %s138
      %s153 = sphi 0, %s139
      %s157 = sphi 0, %s157
      %s159 = sphi 0, %s157
      %s160 = sphi 0, %s159
      %s174 = sphi 0, %s160
      %s180 = sphi 0, %s182
      %s183 = sphi 0, %s180
      %s184 = sphi 0, %s183
      %s200 = sphi 0, %s184
    $region4: #{tpu_custom_call.1} parent=1 // loop_header_branch
      %21 = sbr.rel (%p19) target = $region8
    $region5: #{tpu_custom_call.1} parent=1 // loop_body
      %s23 = ssub.s32 %s18, 1
      %s24 = ssub.s32 %s18, 2
      %s25 = sadd.s32 %s18, 1
      %s26 = ssub.s32 %s18, %s25
      %p27 = scmp.eq.s32.totalorder %s26, 0
      %s29 = sadd.s32 %s28, 1
      %s30 = scalar_select %p27, %s28, %s29
      %p33 = pneg %p27
      %p34 = scmp.eq.s32.totalorder %s18, 1
      %p35 = por %p33, %p34
      %p36 = scmp.ne.s32.totalorder %s28, %s31
      %p37 = scmp.eq.s32.totalorder %s18, 0
      %p38 = por %p36, %p37
      %p39 = scmp.ne.s32.totalorder %s28, %s31
      %p40 = scmp.eq.s32.totalorder %s23, 1
      %p41 = por %p39, %p40
      %p42 = scmp.ne.s32.totalorder %s31, %s32
      %p43 = scmp.eq.s32.totalorder %s23, 0
      %p44 = por %p42, %p43
      %p45 = scmp.ne.s32.totalorder %s31, %s32
      %p46 = scmp.eq.s32.totalorder %s24, 1
      %p47 = por %p45, %p46
      %p49 = scmp.ne.s32.totalorder %s32, %s48
      %p50 = scmp.eq.s32.totalorder %s24, 0
      %p51 = por %p49, %p50
      %s53 = sadd.s32 %s52, 1
      %p56 = scmp.eq.s32.totalorder %s18, 1
      %p57 = scmp.ne.s32.totalorder %s52, %s54
      %p58 = scmp.eq.s32.totalorder %s18, 0
      %p59 = por %p57, %p58
      %p60 = scmp.ne.s32.totalorder %s52, %s54
      %p61 = scmp.eq.s32.totalorder %s23, 1
      %p62 = por %p60, %p61
      %p63 = scmp.ne.s32.totalorder %s54, %s55
      %p64 = scmp.eq.s32.totalorder %s23, 0
      %p65 = por %p63, %p64
      %p66 = scmp.ne.s32.totalorder %s54, %s55
      %p67 = scmp.eq.s32.totalorder %s24, 1
      %p68 = por %p66, %p67
      %p70 = scmp.ne.s32.totalorder %s55, %s69
      %p71 = scmp.eq.s32.totalorder %s24, 0
      %p72 = por %p70, %p71
      %s74 = sadd.s32 %s73, 1
      %p77 = scmp.eq.s32.totalorder %s18, 1
      %p78 = scmp.ne.s32.totalorder %s73, %s75
      %p79 = scmp.eq.s32.totalorder %s18, 0
      %p80 = por %p78, %p79
      %p81 = scmp.ne.s32.totalorder %s73, %s75
      %p82 = scmp.eq.s32.totalorder %s23, 1
      %p83 = por %p81, %p82
      %p84 = scmp.ne.s32.totalorder %s75, %s76
      %p85 = scmp.eq.s32.totalorder %s23, 0
      %p86 = por %p84, %p85
      %p87 = scmp.ne.s32.totalorder %s75, %s76
      %p88 = scmp.eq.s32.totalorder %s24, 1
      %p89 = por %p87, %p88
      %p91 = scmp.ne.s32.totalorder %s76, %s90
      %p92 = scmp.eq.s32.totalorder %s24, 0
      %p93 = por %p91, %p92
      %s95 = sadd.s32 %s94, 1
      %p98 = scmp.eq.s32.totalorder %s18, 1
      %p99 = scmp.ne.s32.totalorder %s94, %s96
      %p100 = scmp.eq.s32.totalorder %s18, 0
      %p101 = por %p99, %p100
      %p102 = scmp.ne.s32.totalorder %s94, %s96
      %p103 = scmp.eq.s32.totalorder %s23, 1
      %p104 = por %p102, %p103
      %p105 = scmp.ne.s32.totalorder %s96, %s97
      %p106 = scmp.eq.s32.totalorder %s23, 0
      %p107 = por %p105, %p106
      %p108 = scmp.ne.s32.totalorder %s96, %s97
      %p109 = scmp.eq.s32.totalorder %s24, 1
      %p110 = por %p108, %p109
      %p112 = scmp.ne.s32.totalorder %s97, %s111
      %p113 = scmp.eq.s32.totalorder %s24, 0
      %p114 = por %p112, %p113
      %s116 = sadd.s32 %s115, 1
      %p119 = scmp.eq.s32.totalorder %s18, 1
      %p120 = scmp.ne.s32.totalorder %s115, %s117
      %p121 = scmp.eq.s32.totalorder %s18, 0
      %p122 = por %p120, %p121
      %p123 = scmp.ne.s32.totalorder %s115, %s117
      %p124 = scmp.eq.s32.totalorder %s23, 1
      %p125 = por %p123, %p124
      %p126 = scmp.ne.s32.totalorder %s117, %s118
      %p127 = scmp.eq.s32.totalorder %s23, 0
      %p128 = por %p126, %p127
      %p129 = scmp.ne.s32.totalorder %s117, %s118
      %p130 = scmp.eq.s32.totalorder %s24, 1
      %p131 = por %p129, %p130
      %p133 = scmp.ne.s32.totalorder %s118, %s132
      %p134 = scmp.eq.s32.totalorder %s24, 0
      %p135 = por %p133, %p134
      %s137 = sadd.s32 %s136, 1
      %p140 = scmp.eq.s32.totalorder %s18, 1
      %p141 = scmp.ne.s32.totalorder %s136, %s138
      %p142 = scmp.eq.s32.totalorder %s18, 0
      %p143 = por %p141, %p142
      %p144 = scmp.ne.s32.totalorder %s136, %s138
      %p145 = scmp.eq.s32.totalorder %s23, 1
      %p146 = por %p144, %p145
      %p147 = scmp.ne.s32.totalorder %s138, %s139
      %p148 = scmp.eq.s32.totalorder %s23, 0
      %p149 = por %p147, %p148
      %p150 = scmp.ne.s32.totalorder %s138, %s139
      %p151 = scmp.eq.s32.totalorder %s24, 1
      %p152 = por %p150, %p151
      %p154 = scmp.ne.s32.totalorder %s139, %s153
      %p155 = scmp.eq.s32.totalorder %s24, 0
      %p156 = por %p154, %p155
      %s158 = sadd.s32 %s157, 1
      %p161 = scmp.eq.s32.totalorder %s18, 1
      %p162 = scmp.ne.s32.totalorder %s157, %s159
      %p163 = scmp.eq.s32.totalorder %s18, 0
      %p164 = por %p162, %p163
      %p165 = scmp.ne.s32.totalorder %s157, %s159
      %p166 = scmp.eq.s32.totalorder %s23, 1
      %p167 = por %p165, %p166
      %p168 = scmp.ne.s32.totalorder %s159, %s160
      %p169 = scmp.eq.s32.totalorder %s23, 0
      %p170 = por %p168, %p169
      %p171 = scmp.ne.s32.totalorder %s159, %s160
      %p172 = scmp.eq.s32.totalorder %s24, 1
      %p173 = por %p171, %p172
      %p175 = scmp.ne.s32.totalorder %s160, %s174
      %p176 = scmp.eq.s32.totalorder %s24, 0
      %p177 = por %p175, %p176
      %s178 = ssub.s32 %s18, %s25
      %p179 = scmp.eq.s32.totalorder %s178, 0
      %s181 = sadd.s32 %s180, 1
      %s182 = scalar_select %p179, %s180, %s181
      %p185 = pneg %p179
      %p186 = scmp.eq.s32.totalorder %s18, 1
      %p187 = por %p185, %p186
      %p188 = scmp.ne.s32.totalorder %s180, %s183
      %p189 = scmp.eq.s32.totalorder %s18, 0
      %p190 = por %p188, %p189
      %p191 = scmp.ne.s32.totalorder %s180, %s183
      %p192 = scmp.eq.s32.totalorder %s23, 1
      %p193 = por %p191, %p192
      %p194 = scmp.ne.s32.totalorder %s183, %s184
      %p195 = scmp.eq.s32.totalorder %s23, 0
      %p196 = por %p194, %p195
      %p197 = scmp.ne.s32.totalorder %s183, %s184
      %p198 = scmp.eq.s32.totalorder %s24, 1
      %p199 = por %p197, %p198
      %p201 = scmp.ne.s32.totalorder %s184, %s200
      %p202 = scmp.eq.s32.totalorder %s24, 0
      %p203 = por %p201, %p202
      %p204 = scmp.le.s32.totalorder 1, %s18
      %p205 = scmp.lt.s32.totalorder %s18, 3
      %p206 = pnand %p204, %p205
      %p207 = pneg %p206
      // Predicated region
      $region9: #{tpu_custom_call.1} parent=5 // pred_check
        _
      $region10: #{tpu_custom_call.1} parent=5 // pred_check_branch
        %209 = sbr.rel (%p206) target = $region12
      $region11: #{tpu_custom_call.1} parent=5 // pred_region
        %s210 = ssub.s32 %s18, 1
        // Predicated region
        $region13: #{tpu_custom_call.1} parent=11 // pred_check
          %p211 = pneg %p65
        $region14: #{tpu_custom_call.1} parent=11 // pred_check_branch
          %213 = sbr.rel (%p211) target = $region16
        $region15: #{tpu_custom_call.1} parent=11 // pred_region
          _
        $region16: #{tpu_custom_call.1} parent=11 // pred_fallthru
          _
        // Predicated region
        $region17: #{tpu_custom_call.1} parent=11 // pred_check
          %p214 = pneg %p86
        $region18: #{tpu_custom_call.1} parent=11 // pred_check_branch
          %216 = sbr.rel (%p214) target = $region20
        $region19: #{tpu_custom_call.1} parent=11 // pred_region
          _
        $region20: #{tpu_custom_call.1} parent=11 // pred_fallthru
          _
        // Predicated region
        $region21: #{tpu_custom_call.1} parent=11 // pred_check
          %p217 = pneg %p107
        $region22: #{tpu_custom_call.1} parent=11 // pred_check_branch
          %219 = sbr.rel (%p217) target = $region24
        $region23: #{tpu_custom_call.1} parent=11 // pred_region
          _
        $region24: #{tpu_custom_call.1} parent=11 // pred_fallthru
          _
        // Predicated region
        $region25: #{tpu_custom_call.1} parent=11 // pred_check
          %p220 = pneg %p128
        $region26: #{tpu_custom_call.1} parent=11 // pred_check_branch
          %222 = sbr.rel (%p220) target = $region28
        $region27: #{tpu_custom_call.1} parent=11 // pred_region
          _
        $region28: #{tpu_custom_call.1} parent=11 // pred_fallthru
          _
        // Predicated region
        $region29: #{tpu_custom_call.1} parent=11 // pred_check
          %p223 = pneg %p149
        $region30: #{tpu_custom_call.1} parent=11 // pred_check_branch
          %225 = sbr.rel (%p223) target = $region32
        $region31: #{tpu_custom_call.1} parent=11 // pred_region
          _
        $region32: #{tpu_custom_call.1} parent=11 // pred_fallthru
          _
        // Predicated region
        $region33: #{tpu_custom_call.1} parent=11 // pred_check
          %p226 = pneg %p170
        $region34: #{tpu_custom_call.1} parent=11 // pred_check_branch
          %228 = sbr.rel (%p226) target = $region36
        $region35: #{tpu_custom_call.1} parent=11 // pred_region
          _
        $region36: #{tpu_custom_call.1} parent=11 // pred_fallthru
          _
      $region12: #{tpu_custom_call.1} parent=5 // pred_fallthru
        _
      %p229 = scmp.lt.s32.totalorder %s18, 2
      // Predicated region
      $region37: #{tpu_custom_call.1} parent=5 // pred_check
        %p230 = pneg %p229
      $region38: #{tpu_custom_call.1} parent=5 // pred_check_branch
        %232 = sbr.rel (%p230) target = $region40
      $region39: #{tpu_custom_call.1} parent=5 // pred_region
        // Predicated region
        $region41: #{tpu_custom_call.1} parent=39 // pred_check
          %p233 = pneg %p38
        $region42: #{tpu_custom_call.1} parent=39 // pred_check_branch
          %235 = sbr.rel (%p233) target = $region44
        $region43: #{tpu_custom_call.1} parent=39 // pred_region
          %s236 = sand.u32 %s28, 1
          %s237 = sand.u32 %s28, 1
          %s238 = smul.addr %s237, 16
          %s239 = scalar_lea.vmem [#allocation3], %s238
          %s240 = smul.addr %s18, 8
          %s241 = scalar_lea.vmem %s0, %s240
          // Predicated region
          $region45: #{tpu_custom_call.1} parent=43 // pred_check
            _
          $region46: #{tpu_custom_call.1} parent=43 // pred_check_branch
            %243 = sbr.rel (0) target = $region48
          $region47: #{tpu_custom_call.1} parent=43 // pred_region
            // Predicated region
            $region49: #{tpu_custom_call.1} parent=47 // pred_check
              _
            $region50: #{tpu_custom_call.1} parent=47 // pred_check_branch
              %245 = sbr.rel (0) target = $region52
            $region51: #{tpu_custom_call.1} parent=47 // pred_region
              // Predicated region
              $region64: #{tpu_custom_call.1} parent=51 // pred_check
                _
              $region65: #{tpu_custom_call.1} parent=51 // pred_check_branch
                %262 = sbr.rel (0) target = $region67
              $region66: #{tpu_custom_call.1} parent=51 // pred_region
                loop: start=0, step=1, limit=1
                $region68: #{tpu_custom_call.1} parent=66 // loop_pre_header
                  _
                $region69: #{tpu_custom_call.1} parent=66 // loop_header
                  %s264 = sphi 0, %s268
                  %p265 = scmp.ge.s32.totalorder %s264, 1
                  %s269 = sphi %s241, %s241
                  %s270 = sphi %s239, %s239
                $region70: #{tpu_custom_call.1} parent=66 // loop_header_branch
                  %267 = sbr.rel (%p265) target = $region74
                $region71: #{tpu_custom_call.1} parent=66 // loop_body
                  %v271 = vld [vmem:[%s269] sm:$0xff]
                  %272 = vst [vmem:[%s270] sm:$0xff] %v271
                  %v273 = vld [vmem:[%s269 + $0x10] sm:$0xff]
                  %274 = vst [vmem:[%s270 + $0x8] sm:$0xff] %v273
                $region72: #{tpu_custom_call.1} parent=66 // loop_footer
                  %s268 = sadd.s32 1, %s264
                $region73: #{tpu_custom_call.1} parent=66 // loop_footer_branch
                  %263 = sbr.rel target = $region69
                $region74: #{tpu_custom_call.1} parent=66 // loop_exit
                  _
              $region67: #{tpu_custom_call.1} parent=51 // pred_fallthru
                _
              // Predicated region
              $region75: #{tpu_custom_call.1} parent=51 // pred_check
                _
              $region76: #{tpu_custom_call.1} parent=51 // pred_check_branch
                %276 = sbr.rel target = $region78
              $region77: #{tpu_custom_call.1} parent=51 // pred_region
                _
              $region78: #{tpu_custom_call.1} parent=51 // pred_fallthru
                _
            $region52: #{tpu_custom_call.1} parent=47 // pred_fallthru
              _
            // Predicated region
            $region53: #{tpu_custom_call.1} parent=47 // pred_check
              _
            $region54: #{tpu_custom_call.1} parent=47 // pred_check_branch
              %247 = sbr.rel target = $region56
            $region55: #{tpu_custom_call.1} parent=47 // pred_region
              loop: start=0, step=1, limit=1
              $region57: #{tpu_custom_call.1} parent=55 // loop_pre_header
                _
              $region58: #{tpu_custom_call.1} parent=55 // loop_header
                %s250 = sphi 0, %s254
                %p251 = scmp.ge.s32.totalorder %s250, 1
                %s255 = sphi %s241, %s241
                %s256 = sphi %s239, %s239
              $region59: #{tpu_custom_call.1} parent=55 // loop_header_branch
                %253 = sbr.rel (%p251) target = $region63
              $region60: #{tpu_custom_call.1} parent=55 // loop_body
                %v257 = vld [vmem:[%s255] sm:$0xff]
                %258 = vst [vmem:[%s256] sm:$0xff] %v257
                %v259 = vld [vmem:[%s255 + $0x10] sm:$0xff]
                %260 = vst [vmem:[%s256 + $0x8] sm:$0xff] %v259
              $region61: #{tpu_custom_call.1} parent=55 // loop_footer
                %s254 = sadd.s32 1, %s250
              $region62: #{tpu_custom_call.1} parent=55 // loop_footer_branch
                %249 = sbr.rel target = $region58
              $region63: #{tpu_custom_call.1} parent=55 // loop_exit
                _
            $region56: #{tpu_custom_call.1} parent=47 // pred_fallthru
              _
          $region48: #{tpu_custom_call.1} parent=43 // pred_fallthru
            _
          %277 = vnop
        $region44: #{tpu_custom_call.1} parent=39 // pred_fallthru
          _
      $region40: #{tpu_custom_call.1} parent=5 // pred_fallthru
        _
      %p278 = scmp.le.s32.totalorder 1, %s18
      %p279 = scmp.lt.s32.totalorder %s18, 3
      %p280 = pnand %p278, %p279
      %p281 = pneg %p280
      // Predicated region
      $region79: #{tpu_custom_call.1} parent=5 // pred_check
        _
      $region80: #{tpu_custom_call.1} parent=5 // pred_check_branch
        %283 = sbr.rel (%p280) target = $region82
      $region81: #{tpu_custom_call.1} parent=5 // pred_region
        %s284 = ssub.s32 %s18, 1
        %s285 = sand.u32 %s31, 1
        %s286 = sand.u32 %s31, 1
        %s287 = smul.addr %s286, 16
        %s288 = scalar_lea.vmem [#allocation3], %s287
        // Predicated region
        $region83: #{tpu_custom_call.1} parent=81 // pred_check
          %p289 = pneg %p44
        $region84: #{tpu_custom_call.1} parent=81 // pred_check_branch
          %291 = sbr.rel (%p289) target = $region86
        $region85: #{tpu_custom_call.1} parent=81 // pred_region
          _
        $region86: #{tpu_custom_call.1} parent=81 // pred_fallthru
          _
        %s292 = sand.u32 %s31, 1
        %s293 = sand.u32 %s31, 1
        %s294 = smul.addr %s293, 16
        %s295 = scalar_lea.vmem [#allocation3], %s294
        %p296 = pneg %p44
        %p297 = pneg %p41
        %p298 = pneg %p65
        %p299 = pneg %p62
        %p300 = pneg %p86
        %p301 = pneg %p83
        %p302 = pneg %p107
        %p303 = pneg %p104
        %p304 = pneg %p128
        %p305 = pneg %p125
        %p306 = pneg %p149
        %p307 = pneg %p146
        %p308 = pneg %p170
        %p309 = pneg %p167
        %p310 = pneg %p196
        %p311 = pneg %p193
        %s312 = sand.u32 %s183, 1
        %s313 = scalar_lea.sflag [#allocation5], %s312
        %s314 = sand.u32 %s183, 1
        %s315 = scalar_lea.vmem [#allocation4], %s314
        %v316 = vld [vmem:[%s288] sm:$0xff]
        %v317 = vld [vmem:[%s288 + $0x8] sm:$0xff]
        %v318 = vld [vmem:[%s1] sm:$0xff]
        %v319 = vld [vmem:[%s1 + $0x8] sm:$0xff]
        %v320 = vld [vmem:[%s1 + $0x10] sm:$0xff]
        %v321 = vld [vmem:[%s1 + $0x18] sm:$0xff]
        %v322 = vld [vmem:[%s2] sm:$0xff]
        %v323 = vld [vmem:[%s2 + $0x8] sm:$0xff]
        %v324 = vld [vmem:[%s2 + $0x10] sm:$0xff]
        %v325 = vld [vmem:[%s2 + $0x18] sm:$0xff]
        %327 = vset.pattern.permute.xlu0 0
        %328 = vperm.xlu0 %327, %v322
        %v329 = vpop.permute.xlu0 %328
        %332 = vset.pattern.permute.xlu0 0
        %333 = vperm.xlu0 %332, %v323
        %v334 = vpop.permute.xlu0 %333
        %337 = vset.pattern.permute.xlu0 0
        %338 = vperm.xlu0 %337, %v324
        %v339 = vpop.permute.xlu0 %338
        %342 = vset.pattern.permute.xlu0 0
        %343 = vperm.xlu0 %342, %v325
        %v344 = vpop.permute.xlu0 %343
        %vm346 = vcmask 130048
        %v348 = vsel %vm346, %v318, 0
        %v351 = vsel %vm346, %v319, 0
        %v354 = vsel %vm346, %v320, 0
        %v357 = vsel %vm346, %v321, 0
        %359 = vmatprep.subr.mxu0 0.0
        %360 = vmatpush1.msra.mxu0 %v316
        %361 = vmatprep.subr.mxu0 0.0
        %362 = vmatpush1.msra.mxu0 %v317
        %363 = vmatprep.subr.mxu0 0.0
        %364 = vmatpush1.msra.mxu0 0.0
        %365 = vmatprep.subr.mxu0 0.0
        %366 = vmatpush1.msra.mxu0 0.0
        %367 = vmatprep.subr.mxu0 0.0
        %368 = vmatpush1.msra.mxu0 0.0
        %369 = vmatprep.subr.mxu0 0.0
        %370 = vmatpush1.msra.mxu0 0.0
        %371 = vmatprep.subr.mxu0 0.0
        %372 = vmatpush1.msra.mxu0 0.0
        %373 = vmatprep.subr.mxu0 0.0
        %374 = vmatpush1.msra.mxu0 0.0
        %375 = vmatprep.subr.mxu0 0.0
        %376 = vmatpush1.msra.mxu0 0.0
        %377 = vmatprep.subr.mxu0 0.0
        %378 = vmatpush1.msra.mxu0 0.0
        %379 = vmatprep.subr.mxu0 0.0
        %380 = vmatpush1.msra.mxu0 0.0
        %381 = vmatprep.subr.mxu0 0.0
        %382 = vmatpush1.msra.mxu0 0.0
        %383 = vmatprep.subr.mxu0 0.0
        %384 = vmatpush1.msra.mxu0 0.0
        %385 = vmatprep.subr.mxu0 0.0
        %386 = vmatpush1.msra.mxu0 0.0
        %387 = vmatprep.subr.mxu0 0.0
        %388 = vmatpush1.msra.mxu0 0.0
        %389 = vmatprep.subr.mxu0 0.0
        %390 = vmatpush1.msra.mxu0 0.0
        %391 = vmatprep.subr.mxu0 0.0
        %392 = vmatpush1.msra.mxu0 0.0
        %393 = vmatprep.subr.mxu0 0.0
        %394 = vmatpush1.msra.mxu0 0.0
        %395 = vmatprep.subr.mxu0 0.0
        %396 = vmatpush1.msra.mxu0 0.0
        %397 = vmatprep.subr.mxu0 0.0
        %398 = vmatpush1.msra.mxu0 0.0
        %399 = vmatprep.subr.mxu0 0.0
        %400 = vmatpush1.msra.mxu0 0.0
        %401 = vmatprep.subr.mxu0 0.0
        %402 = vmatpush1.msra.mxu0 0.0
        %403 = vmatprep.subr.mxu0 0.0
        %404 = vmatpush1.msra.mxu0 0.0
        %405 = vmatprep.subr.mxu0 0.0
        %406 = vmatpush1.msra.mxu0 0.0
        %407 = vmatprep.subr.mxu0 0.0
        %408 = vmatpush1.msra.mxu0 0.0
        %409 = vmatprep.subr.mxu0 0.0
        %410 = vmatpush1.msra.mxu0 0.0
        %411 = vmatprep.subr.mxu0 0.0
        %412 = vmatpush1.msra.mxu0 0.0
        %413 = vmatprep.subr.mxu0 0.0
        %414 = vmatpush1.msra.mxu0 0.0
        %415 = vmatprep.subr.mxu0 0.0
        %416 = vmatpush1.msra.mxu0 0.0
        %417 = vmatprep.subr.mxu0 0.0
        %418 = vmatpush1.msra.mxu0 0.0
        %419 = vmatprep.subr.mxu0 0.0
        %420 = vmatpush1.msra.mxu0 0.0
        %421 = vmatprep.subr.mxu0 0.0
        %422 = vmatpush1.msra.mxu0 0.0
        %423 = vmatprep.mubr.f32.mxu0 0.0
        %424 = vmatmul.mubr.f32.gmra.mrb[0].mxu0 %v348
        %v425 = vpop.f32.mrb[0].mxu0
        %v426 = vadd.f32 %v329, %v425
        %v427 = vpop.f32.mrb[0].mxu0
        %428 = vmatprep.mubr.f32.mxu0 0.0
        %429 = vmatmul.mubr.f32.gmra.mrb[0].mxu0 %v351
        %v430 = vpop.f32.mrb[0].mxu0
        %v431 = vadd.f32 %v334, %v430
        %v432 = vpop.f32.mrb[0].mxu0
        %433 = vmatprep.mubr.f32.mxu0 0.0
        %434 = vmatmul.mubr.f32.gmra.mrb[0].mxu0 %v354
        %v435 = vpop.f32.mrb[0].mxu0
        %v436 = vadd.f32 %v339, %v435
        %v437 = vpop.f32.mrb[0].mxu0
        %438 = vmatprep.mubr.f32.mxu0 0.0
        %439 = vmatmul.mubr.f32.gmra.mrb[0].mxu0 %v357
        %v440 = vpop.f32.mrb[0].mxu0
        %v441 = vadd.f32 %v344, %v440
        %v442 = vpop.f32.mrb[0].mxu0
        %443 = vdwg.mxu0
        %vm444 = vcmp.gt.f32.partialorder %v426, 0.0
        %vm445 = vcmp.gt.f32.partialorder %v431, 0.0
        %vm446 = vcmp.gt.f32.partialorder %v436, 0.0
        %vm447 = vcmp.gt.f32.partialorder %v441, 0.0
        %v448 = vmul.f32 %v426, 0.01
        %v449 = vmul.f32 %v431, 0.01
        %v450 = vmul.f32 %v436, 0.01
        %v451 = vmul.f32 %v441, 0.01
        %v452 = vsel %vm444, %v426, %v448
        %v453 = vsel %vm445, %v431, %v449
        %v454 = vsel %vm446, %v436, %v450
        %v455 = vsel %vm447, %v441, %v451
        %v456 = vld [vmem:[%s3] sm:$0xff]
        %v457 = vld [vmem:[%s3 + $0x8] sm:$0xff]
        %v458 = vld [vmem:[%s3 + $0x10] sm:$0xff]
        %v459 = vld [vmem:[%s3 + $0x18] sm:$0xff]
        %v460 = vld [vmem:[%s4] sm:$0xff]
        %v461 = vld [vmem:[%s4 + $0x8] sm:$0xff]
        %v462 = vld [vmem:[%s4 + $0x10] sm:$0xff]
        %v463 = vld [vmem:[%s4 + $0x18] sm:$0xff]
        %465 = vset.pattern.permute.xlu0 0
        %466 = vperm.xlu0 %465, %v460
        %v467 = vpop.permute.xlu0 %466
        %470 = vset.pattern.permute.xlu0 0
        %471 = vperm.xlu0 %470, %v461
        %v472 = vpop.permute.xlu0 %471
        %475 = vset.pattern.permute.xlu0 0
        %476 = vperm.xlu0 %475, %v462
        %v477 = vpop.permute.xlu0 %476
        %480 = vset.pattern.permute.xlu0 0
        %481 = vperm.xlu0 %480, %v463
        %v482 = vpop.permute.xlu0 %481
        %vm484 = vcmask 261120
        %v486 = vsel %vm484, %v456, 0
        %v489 = vsel %vm484, %v457, 0
        %v492 = vsel %vm484, %v458, 0
        %v495 = vsel %vm484, %v459, 0
        %497 = vmatprep.subr.mxu0 0.0
        %498 = vmatpush1.msra.mxu0 %v452
        %499 = vmatprep.subr.mxu0 0.0
        %500 = vmatpush1.msra.mxu0 %v453
        %501 = vmatprep.subr.mxu0 0.0
        %502 = vmatpush1.msra.mxu0 %v454
        %503 = vmatprep.subr.mxu0 0.0
        %504 = vmatpush1.msra.mxu0 %v455
        %505 = vmatprep.subr.mxu0 0.0
        %506 = vmatpush1.msra.mxu0 0.0
        %507 = vmatprep.subr.mxu0 0.0
        %508 = vmatpush1.msra.mxu0 0.0
        %509 = vmatprep.subr.mxu0 0.0
        %510 = vmatpush1.msra.mxu0 0.0
        %511 = vmatprep.subr.mxu0 0.0
        %512 = vmatpush1.msra.mxu0 0.0
        %513 = vmatprep.subr.mxu0 0.0
        %514 = vmatpush1.msra.mxu0 0.0
        %515 = vmatprep.subr.mxu0 0.0
        %516 = vmatpush1.msra.mxu0 0.0
        %517 = vmatprep.subr.mxu0 0.0
        %518 = vmatpush1.msra.mxu0 0.0
        %519 = vmatprep.subr.mxu0 0.0
        %520 = vmatpush1.msra.mxu0 0.0
        %521 = vmatprep.subr.mxu0 0.0
        %522 = vmatpush1.msra.mxu0 0.0
        %523 = vmatprep.subr.mxu0 0.0
        %524 = vmatpush1.msra.mxu0 0.0
        %525 = vmatprep.subr.mxu0 0.0
        %526 = vmatpush1.msra.mxu0 0.0
        %527 = vmatprep.subr.mxu0 0.0
        %528 = vmatpush1.msra.mxu0 0.0
        %529 = vmatprep.subr.mxu0 0.0
        %530 = vmatpush1.msra.mxu0 0.0
        %531 = vmatprep.subr.mxu0 0.0
        %532 = vmatpush1.msra.mxu0 0.0
        %533 = vmatprep.subr.mxu0 0.0
        %534 = vmatpush1.msra.mxu0 0.0
        %535 = vmatprep.subr.mxu0 0.0
        %536 = vmatpush1.msra.mxu0 0.0
        %537 = vmatprep.subr.mxu0 0.0
        %538 = vmatpush1.msra.mxu0 0.0
        %539 = vmatprep.subr.mxu0 0.0
        %540 = vmatpush1.msra.mxu0 0.0
        %541 = vmatprep.subr.mxu0 0.0
        %542 = vmatpush1.msra.mxu0 0.0
        %543 = vmatprep.subr.mxu0 0.0
        %544 = vmatpush1.msra.mxu0 0.0
        %545 = vmatprep.subr.mxu0 0.0
        %546 = vmatpush1.msra.mxu0 0.0
        %547 = vmatprep.subr.mxu0 0.0
        %548 = vmatpush1.msra.mxu0 0.0
        %549 = vmatprep.subr.mxu0 0.0
        %550 = vmatpush1.msra.mxu0 0.0
        %551 = vmatprep.subr.mxu0 0.0
        %552 = vmatpush1.msra.mxu0 0.0
        %553 = vmatprep.subr.mxu0 0.0
        %554 = vmatpush1.msra.mxu0 0.0
        %555 = vmatprep.subr.mxu0 0.0
        %556 = vmatpush1.msra.mxu0 0.0
        %557 = vmatprep.subr.mxu0 0.0
        %558 = vmatpush1.msra.mxu0 0.0
        %559 = vmatprep.subr.mxu0 0.0
        %560 = vmatpush1.msra.mxu0 0.0
        %561 = vmatprep.mubr.f32.mxu0 0.0
        %562 = vmatmul.mubr.f32.gmra.mrb[0].mxu0 %v486
        %v563 = vpop.f32.mrb[0].mxu0
        %v564 = vadd.f32 %v467, %v563
        %v565 = vpop.f32.mrb[0].mxu0
        %566 = vmatprep.mubr.f32.mxu0 0.0
        %567 = vmatmul.mubr.f32.gmra.mrb[0].mxu0 %v489
        %v568 = vpop.f32.mrb[0].mxu0
        %v569 = vadd.f32 %v472, %v568
        %v570 = vpop.f32.mrb[0].mxu0
        %571 = vmatprep.mubr.f32.mxu0 0.0
        %572 = vmatmul.mubr.f32.gmra.mrb[0].mxu0 %v492
        %v573 = vpop.f32.mrb[0].mxu0
        %v574 = vadd.f32 %v477, %v573
        %v575 = vpop.f32.mrb[0].mxu0
        %576 = vmatprep.mubr.f32.mxu0 0.0
        %577 = vmatmul.mubr.f32.gmra.mrb[0].mxu0 %v495
        %v578 = vpop.f32.mrb[0].mxu0
        %v579 = vadd.f32 %v482, %v578
        %v580 = vpop.f32.mrb[0].mxu0
        %581 = vdwg.mxu0
        %vm582 = vcmp.gt.f32.partialorder %v564, 0.0
        %vm583 = vcmp.gt.f32.partialorder %v569, 0.0
        %vm584 = vcmp.gt.f32.partialorder %v574, 0.0
        %vm585 = vcmp.gt.f32.partialorder %v579, 0.0
        %v586 = vmul.f32 %v564, 0.01
        %v587 = vmul.f32 %v569, 0.01
        %v588 = vmul.f32 %v574, 0.01
        %v589 = vmul.f32 %v579, 0.01
        %v590 = vsel %vm582, %v564, %v586
        %v591 = vsel %vm583, %v569, %v587
        %v592 = vsel %vm584, %v574, %v588
        %v593 = vsel %vm585, %v579, %v589
        %s594 = scalar_lea.vmem %s3, 32
        %v595 = vld [vmem:[%s594] sm:$0xff]
        %v596 = vld [vmem:[%s594 + $0x8] sm:$0xff]
        %v597 = vld [vmem:[%s594 + $0x10] sm:$0xff]
        %v598 = vld [vmem:[%s594 + $0x18] sm:$0xff]
        %s599 = scalar_lea.vmem %s4, 32
        %v600 = vld [vmem:[%s599] sm:$0xff]
        %v601 = vld [vmem:[%s599 + $0x8] sm:$0xff]
        %v602 = vld [vmem:[%s599 + $0x10] sm:$0xff]
        %v603 = vld [vmem:[%s599 + $0x18] sm:$0xff]
        %605 = vset.pattern.permute.xlu0 0
        %606 = vperm.xlu0 %605, %v600
        %v607 = vpop.permute.xlu0 %606
        %610 = vset.pattern.permute.xlu0 0
        %611 = vperm.xlu0 %610, %v601
        %v612 = vpop.permute.xlu0 %611
        %615 = vset.pattern.permute.xlu0 0
        %616 = vperm.xlu0 %615, %v602
        %v617 = vpop.permute.xlu0 %616
        %620 = vset.pattern.permute.xlu0 0
        %621 = vperm.xlu0 %620, %v603
        %v622 = vpop.permute.xlu0 %621
        %v625 = vsel %vm484, %v595, 0
        %v628 = vsel %vm484, %v596, 0
        %v631 = vsel %vm484, %v597, 0
        %v634 = vsel %vm484, %v598, 0
        %636 = vmatprep.subr.mxu0 0.0
        %637 = vmatpush1.msra.mxu0 %v590
        %638 = vmatprep.subr.mxu0 0.0
        %639 = vmatpush1.msra.mxu0 %v591
        %640 = vmatprep.subr.mxu0 0.0
        %641 = vmatpush1.msra.mxu0 %v592
        %642 = vmatprep.subr.mxu0 0.0
        %643 = vmatpush1.msra.mxu0 %v593
        %644 = vmatprep.subr.mxu0 0.0
        %645 = vmatpush1.msra.mxu0 0.0
        %646 = vmatprep.subr.mxu0 0.0
        %647 = vmatpush1.msra.mxu0 0.0
        %648 = vmatprep.subr.mxu0 0.0
        %649 = vmatpush1.msra.mxu0 0.0
        %650 = vmatprep.subr.mxu0 0.0
        %651 = vmatpush1.msra.mxu0 0.0
        %652 = vmatprep.subr.mxu0 0.0
        %653 = vmatpush1.msra.mxu0 0.0
        %654 = vmatprep.subr.mxu0 0.0
        %655 = vmatpush1.msra.mxu0 0.0
        %656 = vmatprep.subr.mxu0 0.0
        %657 = vmatpush1.msra.mxu0 0.0
        %658 = vmatprep.subr.mxu0 0.0
        %659 = vmatpush1.msra.mxu0 0.0
        %660 = vmatprep.subr.mxu0 0.0
        %661 = vmatpush1.msra.mxu0 0.0
        %662 = vmatprep.subr.mxu0 0.0
        %663 = vmatpush1.msra.mxu0 0.0
        %664 = vmatprep.subr.mxu0 0.0
        %665 = vmatpush1.msra.mxu0 0.0
        %666 = vmatprep.subr.mxu0 0.0
        %667 = vmatpush1.msra.mxu0 0.0
        %668 = vmatprep.subr.mxu0 0.0
        %669 = vmatpush1.msra.mxu0 0.0
        %670 = vmatprep.subr.mxu0 0.0
        %671 = vmatpush1.msra.mxu0 0.0
        %672 = vmatprep.subr.mxu0 0.0
        %673 = vmatpush1.msra.mxu0 0.0
        %674 = vmatprep.subr.mxu0 0.0
        %675 = vmatpush1.msra.mxu0 0.0
        %676 = vmatprep.subr.mxu0 0.0
        %677 = vmatpush1.msra.mxu0 0.0
        %678 = vmatprep.subr.mxu0 0.0
        %679 = vmatpush1.msra.mxu0 0.0
        %680 = vmatprep.subr.mxu0 0.0
        %681 = vmatpush1.msra.mxu0 0.0
        %682 = vmatprep.subr.mxu0 0.0
        %683 = vmatpush1.msra.mxu0 0.0
        %684 = vmatprep.subr.mxu0 0.0
        %685 = vmatpush1.msra.mxu0 0.0
        %686 = vmatprep.subr.mxu0 0.0
        %687 = vmatpush1.msra.mxu0 0.0
        %688 = vmatprep.subr.mxu0 0.0
        %689 = vmatpush1.msra.mxu0 0.0
        %690 = vmatprep.subr.mxu0 0.0
        %691 = vmatpush1.msra.mxu0 0.0
        %692 = vmatprep.subr.mxu0 0.0
        %693 = vmatpush1.msra.mxu0 0.0
        %694 = vmatprep.subr.mxu0 0.0
        %695 = vmatpush1.msra.mxu0 0.0
        %696 = vmatprep.subr.mxu0 0.0
        %697 = vmatpush1.msra.mxu0 0.0
        %698 = vmatprep.subr.mxu0 0.0
        %699 = vmatpush1.msra.mxu0 0.0
        %700 = vmatprep.mubr.f32.mxu0 0.0
        %701 = vmatmul.mubr.f32.gmra.mrb[0].mxu0 %v625
        %v702 = vpop.f32.mrb[0].mxu0
        %v703 = vadd.f32 %v607, %v702
        %v704 = vpop.f32.mrb[0].mxu0
        %705 = vmatprep.mubr.f32.mxu0 0.0
        %706 = vmatmul.mubr.f32.gmra.mrb[0].mxu0 %v628
        %v707 = vpop.f32.mrb[0].mxu0
        %v708 = vadd.f32 %v612, %v707
        %v709 = vpop.f32.mrb[0].mxu0
        %710 = vmatprep.mubr.f32.mxu0 0.0
        %711 = vmatmul.mubr.f32.gmra.mrb[0].mxu0 %v631
        %v712 = vpop.f32.mrb[0].mxu0
        %v713 = vadd.f32 %v617, %v712
        %v714 = vpop.f32.mrb[0].mxu0
        %715 = vmatprep.mubr.f32.mxu0 0.0
        %716 = vmatmul.mubr.f32.gmra.mrb[0].mxu0 %v634
        %v717 = vpop.f32.mrb[0].mxu0
        %v718 = vadd.f32 %v622, %v717
        %v719 = vpop.f32.mrb[0].mxu0
        %720 = vdwg.mxu0
        %vm721 = vcmp.gt.f32.partialorder %v703, 0.0
        %vm722 = vcmp.gt.f32.partialorder %v708, 0.0
        %vm723 = vcmp.gt.f32.partialorder %v713, 0.0
        %vm724 = vcmp.gt.f32.partialorder %v718, 0.0
        %v725 = vmul.f32 %v703, 0.01
        %v726 = vmul.f32 %v708, 0.01
        %v727 = vmul.f32 %v713, 0.01
        %v728 = vmul.f32 %v718, 0.01
        %v729 = vsel %vm721, %v703, %v725
        %v730 = vsel %vm722, %v708, %v726
        %v731 = vsel %vm723, %v713, %v727
        %v732 = vsel %vm724, %v718, %v728
        %s733 = scalar_lea.vmem %s3, 64
        %v734 = vld [vmem:[%s733] sm:$0xff]
        %v735 = vld [vmem:[%s733 + $0x8] sm:$0xff]
        %v736 = vld [vmem:[%s733 + $0x10] sm:$0xff]
        %v737 = vld [vmem:[%s733 + $0x18] sm:$0xff]
        %s738 = scalar_lea.vmem %s4, 64
        %v739 = vld [vmem:[%s738] sm:$0xff]
        %v740 = vld [vmem:[%s738 + $0x8] sm:$0xff]
        %v741 = vld [vmem:[%s738 + $0x10] sm:$0xff]
        %v742 = vld [vmem:[%s738 + $0x18] sm:$0xff]
        %744 = vset.pattern.permute.xlu0 0
        %745 = vperm.xlu0 %744, %v739
        %v746 = vpop.permute.xlu0 %745
        %749 = vset.pattern.permute.xlu0 0
        %750 = vperm.xlu0 %749, %v740
        %v751 = vpop.permute.xlu0 %750
        %754 = vset.pattern.permute.xlu0 0
        %755 = vperm.xlu0 %754, %v741
        %v756 = vpop.permute.xlu0 %755
        %759 = vset.pattern.permute.xlu0 0
        %760 = vperm.xlu0 %759, %v742
        %v761 = vpop.permute.xlu0 %760
        %v764 = vsel %vm484, %v734, 0
        %v767 = vsel %vm484, %v735, 0
        %v770 = vsel %vm484, %v736, 0
        %v773 = vsel %vm484, %v737, 0
        %775 = vmatprep.subr.mxu0 0.0
        %776 = vmatpush1.msra.mxu0 %v729
        %777 = vmatprep.subr.mxu0 0.0
        %778 = vmatpush1.msra.mxu0 %v730
        %779 = vmatprep.subr.mxu0 0.0
        %780 = vmatpush1.msra.mxu0 %v731
        %781 = vmatprep.subr.mxu0 0.0
        %782 = vmatpush1.msra.mxu0 %v732
        %783 = vmatprep.subr.mxu0 0.0
        %784 = vmatpush1.msra.mxu0 0.0
        %785 = vmatprep.subr.mxu0 0.0
        %786 = vmatpush1.msra.mxu0 0.0
        %787 = vmatprep.subr.mxu0 0.0
        %788 = vmatpush1.msra.mxu0 0.0
        %789 = vmatprep.subr.mxu0 0.0
        %790 = vmatpush1.msra.mxu0 0.0
        %791 = vmatprep.subr.mxu0 0.0
        %792 = vmatpush1.msra.mxu0 0.0
        %793 = vmatprep.subr.mxu0 0.0
        %794 = vmatpush1.msra.mxu0 0.0
        %795 = vmatprep.subr.mxu0 0.0
        %796 = vmatpush1.msra.mxu0 0.0
        %797 = vmatprep.subr.mxu0 0.0
        %798 = vmatpush1.msra.mxu0 0.0
        %799 = vmatprep.subr.mxu0 0.0
        %800 = vmatpush1.msra.mxu0 0.0
        %801 = vmatprep.subr.mxu0 0.0
        %802 = vmatpush1.msra.mxu0 0.0
        %803 = vmatprep.subr.mxu0 0.0
        %804 = vmatpush1.msra.mxu0 0.0
        %805 = vmatprep.subr.mxu0 0.0
        %806 = vmatpush1.msra.mxu0 0.0
        %807 = vmatprep.subr.mxu0 0.0
        %808 = vmatpush1.msra.mxu0 0.0
        %809 = vmatprep.subr.mxu0 0.0
        %810 = vmatpush1.msra.mxu0 0.0
        %811 = vmatprep.subr.mxu0 0.0
        %812 = vmatpush1.msra.mxu0 0.0
        %813 = vmatprep.subr.mxu0 0.0
        %814 = vmatpush1.msra.mxu0 0.0
        %815 = vmatprep.subr.mxu0 0.0
        %816 = vmatpush1.msra.mxu0 0.0
        %817 = vmatprep.subr.mxu0 0.0
        %818 = vmatpush1.msra.mxu0 0.0
        %819 = vmatprep.subr.mxu0 0.0
        %820 = vmatpush1.msra.mxu0 0.0
        %821 = vmatprep.subr.mxu0 0.0
        %822 = vmatpush1.msra.mxu0 0.0
        %823 = vmatprep.subr.mxu0 0.0
        %824 = vmatpush1.msra.mxu0 0.0
        %825 = vmatprep.subr.mxu0 0.0
        %826 = vmatpush1.msra.mxu0 0.0
        %827 = vmatprep.subr.mxu0 0.0
        %828 = vmatpush1.msra.mxu0 0.0
        %829 = vmatprep.subr.mxu0 0.0
        %830 = vmatpush1.msra.mxu0 0.0
        %831 = vmatprep.subr.mxu0 0.0
        %832 = vmatpush1.msra.mxu0 0.0
        %833 = vmatprep.subr.mxu0 0.0
        %834 = vmatpush1.msra.mxu0 0.0
        %835 = vmatprep.subr.mxu0 0.0
        %836 = vmatpush1.msra.mxu0 0.0
        %837 = vmatprep.subr.mxu0 0.0
        %838 = vmatpush1.msra.mxu0 0.0
        %839 = vmatprep.mubr.f32.mxu0 0.0
        %840 = vmatmul.mubr.f32.gmra.mrb[0].mxu0 %v764
        %v841 = vpop.f32.mrb[0].mxu0
        %v842 = vadd.f32 %v746, %v841
        %v843 = vpop.f32.mrb[0].mxu0
        %844 = vmatprep.mubr.f32.mxu0 0.0
        %845 = vmatmul.mubr.f32.gmra.mrb[0].mxu0 %v767
        %v846 = vpop.f32.mrb[0].mxu0
        %v847 = vadd.f32 %v751, %v846
        %v848 = vpop.f32.mrb[0].mxu0
        %849 = vmatprep.mubr.f32.mxu0 0.0
        %850 = vmatmul.mubr.f32.gmra.mrb[0].mxu0 %v770
        %v851 = vpop.f32.mrb[0].mxu0
        %v852 = vadd.f32 %v756, %v851
        %v853 = vpop.f32.mrb[0].mxu0
        %854 = vmatprep.mubr.f32.mxu0 0.0
        %855 = vmatmul.mubr.f32.gmra.mrb[0].mxu0 %v773
        %v856 = vpop.f32.mrb[0].mxu0
        %v857 = vadd.f32 %v761, %v856
        %v858 = vpop.f32.mrb[0].mxu0
        %859 = vdwg.mxu0
        %vm860 = vcmp.gt.f32.partialorder %v842, 0.0
        %vm861 = vcmp.gt.f32.partialorder %v847, 0.0
        %vm862 = vcmp.gt.f32.partialorder %v852, 0.0
        %vm863 = vcmp.gt.f32.partialorder %v857, 0.0
        %v864 = vmul.f32 %v842, 0.01
        %v865 = vmul.f32 %v847, 0.01
        %v866 = vmul.f32 %v852, 0.01
        %v867 = vmul.f32 %v857, 0.01
        %v868 = vsel %vm860, %v842, %v864
        %v869 = vsel %vm861, %v847, %v865
        %v870 = vsel %vm862, %v852, %v866
        %v871 = vsel %vm863, %v857, %v867
        %s872 = scalar_lea.vmem %s3, 96
        %v873 = vld [vmem:[%s872] sm:$0xff]
        %v874 = vld [vmem:[%s872 + $0x8] sm:$0xff]
        %v875 = vld [vmem:[%s872 + $0x10] sm:$0xff]
        %v876 = vld [vmem:[%s872 + $0x18] sm:$0xff]
        %s877 = scalar_lea.vmem %s4, 96
        %v878 = vld [vmem:[%s877] sm:$0xff]
        %v879 = vld [vmem:[%s877 + $0x8] sm:$0xff]
        %v880 = vld [vmem:[%s877 + $0x10] sm:$0xff]
        %v881 = vld [vmem:[%s877 + $0x18] sm:$0xff]
        %883 = vset.pattern.permute.xlu0 0
        %884 = vperm.xlu0 %883, %v878
        %v885 = vpop.permute.xlu0 %884
        %888 = vset.pattern.permute.xlu0 0
        %889 = vperm.xlu0 %888, %v879
        %v890 = vpop.permute.xlu0 %889
        %893 = vset.pattern.permute.xlu0 0
        %894 = vperm.xlu0 %893, %v880
        %v895 = vpop.permute.xlu0 %894
        %898 = vset.pattern.permute.xlu0 0
        %899 = vperm.xlu0 %898, %v881
        %v900 = vpop.permute.xlu0 %899
        %v903 = vsel %vm484, %v873, 0
        %v906 = vsel %vm484, %v874, 0
        %v909 = vsel %vm484, %v875, 0
        %v912 = vsel %vm484, %v876, 0
        %914 = vmatprep.subr.mxu0 0.0
        %915 = vmatpush1.msra.mxu0 %v868
        %916 = vmatprep.subr.mxu0 0.0
        %917 = vmatpush1.msra.mxu0 %v869
        %918 = vmatprep.subr.mxu0 0.0
        %919 = vmatpush1.msra.mxu0 %v870
        %920 = vmatprep.subr.mxu0 0.0
        %921 = vmatpush1.msra.mxu0 %v871
        %922 = vmatprep.subr.mxu0 0.0
        %923 = vmatpush1.msra.mxu0 0.0
        %924 = vmatprep.subr.mxu0 0.0
        %925 = vmatpush1.msra.mxu0 0.0
        %926 = vmatprep.subr.mxu0 0.0
        %927 = vmatpush1.msra.mxu0 0.0
        %928 = vmatprep.subr.mxu0 0.0
        %929 = vmatpush1.msra.mxu0 0.0
        %930 = vmatprep.subr.mxu0 0.0
        %931 = vmatpush1.msra.mxu0 0.0
        %932 = vmatprep.subr.mxu0 0.0
        %933 = vmatpush1.msra.mxu0 0.0
        %934 = vmatprep.subr.mxu0 0.0
        %935 = vmatpush1.msra.mxu0 0.0
        %936 = vmatprep.subr.mxu0 0.0
        %937 = vmatpush1.msra.mxu0 0.0
        %938 = vmatprep.subr.mxu0 0.0
        %939 = vmatpush1.msra.mxu0 0.0
        %940 = vmatprep.subr.mxu0 0.0
        %941 = vmatpush1.msra.mxu0 0.0
        %942 = vmatprep.subr.mxu0 0.0
        %943 = vmatpush1.msra.mxu0 0.0
        %944 = vmatprep.subr.mxu0 0.0
        %945 = vmatpush1.msra.mxu0 0.0
        %946 = vmatprep.subr.mxu0 0.0
        %947 = vmatpush1.msra.mxu0 0.0
        %948 = vmatprep.subr.mxu0 0.0
        %949 = vmatpush1.msra.mxu0 0.0
        %950 = vmatprep.subr.mxu0 0.0
        %951 = vmatpush1.msra.mxu0 0.0
        %952 = vmatprep.subr.mxu0 0.0
        %953 = vmatpush1.msra.mxu0 0.0
        %954 = vmatprep.subr.mxu0 0.0
        %955 = vmatpush1.msra.mxu0 0.0
        %956 = vmatprep.subr.mxu0 0.0
        %957 = vmatpush1.msra.mxu0 0.0
        %958 = vmatprep.subr.mxu0 0.0
        %959 = vmatpush1.msra.mxu0 0.0
        %960 = vmatprep.subr.mxu0 0.0
        %961 = vmatpush1.msra.mxu0 0.0
        %962 = vmatprep.subr.mxu0 0.0
        %963 = vmatpush1.msra.mxu0 0.0
        %964 = vmatprep.subr.mxu0 0.0
        %965 = vmatpush1.msra.mxu0 0.0
        %966 = vmatprep.subr.mxu0 0.0
        %967 = vmatpush1.msra.mxu0 0.0
        %968 = vmatprep.subr.mxu0 0.0
        %969 = vmatpush1.msra.mxu0 0.0
        %970 = vmatprep.subr.mxu0 0.0
        %971 = vmatpush1.msra.mxu0 0.0
        %972 = vmatprep.subr.mxu0 0.0
        %973 = vmatpush1.msra.mxu0 0.0
        %974 = vmatprep.subr.mxu0 0.0
        %975 = vmatpush1.msra.mxu0 0.0
        %976 = vmatprep.subr.mxu0 0.0
        %977 = vmatpush1.msra.mxu0 0.0
        %978 = vmatprep.mubr.f32.mxu0 0.0
        %979 = vmatmul.mubr.f32.gmra.mrb[0].mxu0 %v903
        %v980 = vpop.f32.mrb[0].mxu0
        %v981 = vadd.f32 %v885, %v980
        %v982 = vpop.f32.mrb[0].mxu0
        %983 = vmatprep.mubr.f32.mxu0 0.0
        %984 = vmatmul.mubr.f32.gmra.mrb[0].mxu0 %v906
        %v985 = vpop.f32.mrb[0].mxu0
        %v986 = vadd.f32 %v890, %v985
        %v987 = vpop.f32.mrb[0].mxu0
        %988 = vmatprep.mubr.f32.mxu0 0.0
        %989 = vmatmul.mubr.f32.gmra.mrb[0].mxu0 %v909
        %v990 = vpop.f32.mrb[0].mxu0
        %v991 = vadd.f32 %v895, %v990
        %v992 = vpop.f32.mrb[0].mxu0
        %993 = vmatprep.mubr.f32.mxu0 0.0
        %994 = vmatmul.mubr.f32.gmra.mrb[0].mxu0 %v912
        %v995 = vpop.f32.mrb[0].mxu0
        %v996 = vadd.f32 %v900, %v995
        %v997 = vpop.f32.mrb[0].mxu0
        %998 = vdwg.mxu0
        %vm999 = vcmp.gt.f32.partialorder %v981, 0.0
        %vm1000 = vcmp.gt.f32.partialorder %v986, 0.0
        %vm1001 = vcmp.gt.f32.partialorder %v991, 0.0
        %vm1002 = vcmp.gt.f32.partialorder %v996, 0.0
        %v1003 = vmul.f32 %v981, 0.01
        %v1004 = vmul.f32 %v986, 0.01
        %v1005 = vmul.f32 %v991, 0.01
        %v1006 = vmul.f32 %v996, 0.01
        %v1007 = vsel %vm999, %v981, %v1003
        %v1008 = vsel %vm1000, %v986, %v1004
        %v1009 = vsel %vm1001, %v991, %v1005
        %v1010 = vsel %vm1002, %v996, %v1006
        %s1011 = scalar_lea.vmem %s3, 128
        %v1012 = vld [vmem:[%s1011] sm:$0xff]
        %v1013 = vld [vmem:[%s1011 + $0x8] sm:$0xff]
        %v1014 = vld [vmem:[%s1011 + $0x10] sm:$0xff]
        %v1015 = vld [vmem:[%s1011 + $0x18] sm:$0xff]
        %s1016 = scalar_lea.vmem %s4, 128
        %v1017 = vld [vmem:[%s1016] sm:$0xff]
        %v1018 = vld [vmem:[%s1016 + $0x8] sm:$0xff]
        %v1019 = vld [vmem:[%s1016 + $0x10] sm:$0xff]
        %v1020 = vld [vmem:[%s1016 + $0x18] sm:$0xff]
        %1022 = vset.pattern.permute.xlu0 0
        %1023 = vperm.xlu0 %1022, %v1017
        %v1024 = vpop.permute.xlu0 %1023
        %1027 = vset.pattern.permute.xlu0 0
        %1028 = vperm.xlu0 %1027, %v1018
        %v1029 = vpop.permute.xlu0 %1028
        %1032 = vset.pattern.permute.xlu0 0
        %1033 = vperm.xlu0 %1032, %v1019
        %v1034 = vpop.permute.xlu0 %1033
        %1037 = vset.pattern.permute.xlu0 0
        %1038 = vperm.xlu0 %1037, %v1020
        %v1039 = vpop.permute.xlu0 %1038
        %v1042 = vsel %vm484, %v1012, 0
        %v1045 = vsel %vm484, %v1013, 0
        %v1048 = vsel %vm484, %v1014, 0
        %v1051 = vsel %vm484, %v1015, 0
        %1053 = vmatprep.subr.mxu0 0.0
        %1054 = vmatpush1.msra.mxu0 %v1007
        %1055 = vmatprep.subr.mxu0 0.0
        %1056 = vmatpush1.msra.mxu0 %v1008
        %1057 = vmatprep.subr.mxu0 0.0
        %1058 = vmatpush1.msra.mxu0 %v1009
        %1059 = vmatprep.subr.mxu0 0.0
        %1060 = vmatpush1.msra.mxu0 %v1010
        %1061 = vmatprep.subr.mxu0 0.0
        %1062 = vmatpush1.msra.mxu0 0.0
        %1063 = vmatprep.subr.mxu0 0.0
        %1064 = vmatpush1.msra.mxu0 0.0
        %1065 = vmatprep.subr.mxu0 0.0
        %1066 = vmatpush1.msra.mxu0 0.0
        %1067 = vmatprep.subr.mxu0 0.0
        %1068 = vmatpush1.msra.mxu0 0.0
        %1069 = vmatprep.subr.mxu0 0.0
        %1070 = vmatpush1.msra.mxu0 0.0
        %1071 = vmatprep.subr.mxu0 0.0
        %1072 = vmatpush1.msra.mxu0 0.0
        %1073 = vmatprep.subr.mxu0 0.0
        %1074 = vmatpush1.msra.mxu0 0.0
        %1075 = vmatprep.subr.mxu0 0.0
        %1076 = vmatpush1.msra.mxu0 0.0
        %1077 = vmatprep.subr.mxu0 0.0
        %1078 = vmatpush1.msra.mxu0 0.0
        %1079 = vmatprep.subr.mxu0 0.0
        %1080 = vmatpush1.msra.mxu0 0.0
        %1081 = vmatprep.subr.mxu0 0.0
        %1082 = vmatpush1.msra.mxu0 0.0
        %1083 = vmatprep.subr.mxu0 0.0
        %1084 = vmatpush1.msra.mxu0 0.0
        %1085 = vmatprep.subr.mxu0 0.0
        %1086 = vmatpush1.msra.mxu0 0.0
        %1087 = vmatprep.subr.mxu0 0.0
        %1088 = vmatpush1.msra.mxu0 0.0
        %1089 = vmatprep.subr.mxu0 0.0
        %1090 = vmatpush1.msra.mxu0 0.0
        %1091 = vmatprep.subr.mxu0 0.0
        %1092 = vmatpush1.msra.mxu0 0.0
        %1093 = vmatprep.subr.mxu0 0.0
        %1094 = vmatpush1.msra.mxu0 0.0
        %1095 = vmatprep.subr.mxu0 0.0
        %1096 = vmatpush1.msra.mxu0 0.0
        %1097 = vmatprep.subr.mxu0 0.0
        %1098 = vmatpush1.msra.mxu0 0.0
        %1099 = vmatprep.subr.mxu0 0.0
        %1100 = vmatpush1.msra.mxu0 0.0
        %1101 = vmatprep.subr.mxu0 0.0
        %1102 = vmatpush1.msra.mxu0 0.0
        %1103 = vmatprep.subr.mxu0 0.0
        %1104 = vmatpush1.msra.mxu0 0.0
        %1105 = vmatprep.subr.mxu0 0.0
        %1106 = vmatpush1.msra.mxu0 0.0
        %1107 = vmatprep.subr.mxu0 0.0
        %1108 = vmatpush1.msra.mxu0 0.0
        %1109 = vmatprep.subr.mxu0 0.0
        %1110 = vmatpush1.msra.mxu0 0.0
        %1111 = vmatprep.subr.mxu0 0.0
        %1112 = vmatpush1.msra.mxu0 0.0
        %1113 = vmatprep.subr.mxu0 0.0
        %1114 = vmatpush1.msra.mxu0 0.0
        %1115 = vmatprep.subr.mxu0 0.0
        %1116 = vmatpush1.msra.mxu0 0.0
        %1117 = vmatprep.mubr.f32.mxu0 0.0
        %1118 = vmatmul.mubr.f32.gmra.mrb[0].mxu0 %v1042
        %v1119 = vpop.f32.mrb[0].mxu0
        %v1120 = vadd.f32 %v1024, %v1119
        %v1121 = vpop.f32.mrb[0].mxu0
        %1122 = vmatprep.mubr.f32.mxu0 0.0
        %1123 = vmatmul.mubr.f32.gmra.mrb[0].mxu0 %v1045
        %v1124 = vpop.f32.mrb[0].mxu0
        %v1125 = vadd.f32 %v1029, %v1124
        %v1126 = vpop.f32.mrb[0].mxu0
        %1127 = vmatprep.mubr.f32.mxu0 0.0
        %1128 = vmatmul.mubr.f32.gmra.mrb[0].mxu0 %v1048
        %v1129 = vpop.f32.mrb[0].mxu0
        %v1130 = vadd.f32 %v1034, %v1129
        %v1131 = vpop.f32.mrb[0].mxu0
        %1132 = vmatprep.mubr.f32.mxu0 0.0
        %1133 = vmatmul.mubr.f32.gmra.mrb[0].mxu0 %v1051
        %v1134 = vpop.f32.mrb[0].mxu0
        %v1135 = vadd.f32 %v1039, %v1134
        %v1136 = vpop.f32.mrb[0].mxu0
        %1137 = vdwg.mxu0
        %vm1138 = vcmp.gt.f32.partialorder %v1120, 0.0
        %vm1139 = vcmp.gt.f32.partialorder %v1125, 0.0
        %vm1140 = vcmp.gt.f32.partialorder %v1130, 0.0
        %vm1141 = vcmp.gt.f32.partialorder %v1135, 0.0
        %v1142 = vmul.f32 %v1120, 0.01
        %v1143 = vmul.f32 %v1125, 0.01
        %v1144 = vmul.f32 %v1130, 0.01
        %v1145 = vmul.f32 %v1135, 0.01
        %v1146 = vsel %vm1138, %v1120, %v1142
        %v1147 = vsel %vm1139, %v1125, %v1143
        %v1148 = vsel %vm1140, %v1130, %v1144
        %v1149 = vsel %vm1141, %v1135, %v1145
        %s1150 = scalar_lea.vmem %s3, 160
        %v1151 = vld [vmem:[%s1150] sm:$0xff]
        %v1152 = vld [vmem:[%s1150 + $0x8] sm:$0xff]
        %v1153 = vld [vmem:[%s1150 + $0x10] sm:$0xff]
        %v1154 = vld [vmem:[%s1150 + $0x18] sm:$0xff]
        %s1155 = scalar_lea.vmem %s4, 160
        %v1156 = vld [vmem:[%s1155] sm:$0xff]
        %v1157 = vld [vmem:[%s1155 + $0x8] sm:$0xff]
        %v1158 = vld [vmem:[%s1155 + $0x10] sm:$0xff]
        %v1159 = vld [vmem:[%s1155 + $0x18] sm:$0xff]
        %1161 = vset.pattern.permute.xlu0 0
        %1162 = vperm.xlu0 %1161, %v1156
        %v1163 = vpop.permute.xlu0 %1162
        %1166 = vset.pattern.permute.xlu0 0
        %1167 = vperm.xlu0 %1166, %v1157
        %v1168 = vpop.permute.xlu0 %1167
        %1171 = vset.pattern.permute.xlu0 0
        %1172 = vperm.xlu0 %1171, %v1158
        %v1173 = vpop.permute.xlu0 %1172
        %1176 = vset.pattern.permute.xlu0 0
        %1177 = vperm.xlu0 %1176, %v1159
        %v1178 = vpop.permute.xlu0 %1177
        %v1181 = vsel %vm484, %v1151, 0
        %v1184 = vsel %vm484, %v1152, 0
        %v1187 = vsel %vm484, %v1153, 0
        %v1190 = vsel %vm484, %v1154, 0
        %1192 = vmatprep.subr.mxu0 0.0
        %1193 = vmatpush1.msra.mxu0 %v1146
        %1194 = vmatprep.subr.mxu0 0.0
        %1195 = vmatpush1.msra.mxu0 %v1147
        %1196 = vmatprep.subr.mxu0 0.0
        %1197 = vmatpush1.msra.mxu0 %v1148
        %1198 = vmatprep.subr.mxu0 0.0
        %1199 = vmatpush1.msra.mxu0 %v1149
        %1200 = vmatprep.subr.mxu0 0.0
        %1201 = vmatpush1.msra.mxu0 0.0
        %1202 = vmatprep.subr.mxu0 0.0
        %1203 = vmatpush1.msra.mxu0 0.0
        %1204 = vmatprep.subr.mxu0 0.0
        %1205 = vmatpush1.msra.mxu0 0.0
        %1206 = vmatprep.subr.mxu0 0.0
        %1207 = vmatpush1.msra.mxu0 0.0
        %1208 = vmatprep.subr.mxu0 0.0
        %1209 = vmatpush1.msra.mxu0 0.0
        %1210 = vmatprep.subr.mxu0 0.0
        %1211 = vmatpush1.msra.mxu0 0.0
        %1212 = vmatprep.subr.mxu0 0.0
        %1213 = vmatpush1.msra.mxu0 0.0
        %1214 = vmatprep.subr.mxu0 0.0
        %1215 = vmatpush1.msra.mxu0 0.0
        %1216 = vmatprep.subr.mxu0 0.0
        %1217 = vmatpush1.msra.mxu0 0.0
        %1218 = vmatprep.subr.mxu0 0.0
        %1219 = vmatpush1.msra.mxu0 0.0
        %1220 = vmatprep.subr.mxu0 0.0
        %1221 = vmatpush1.msra.mxu0 0.0
        %1222 = vmatprep.subr.mxu0 0.0
        %1223 = vmatpush1.msra.mxu0 0.0
        %1224 = vmatprep.subr.mxu0 0.0
        %1225 = vmatpush1.msra.mxu0 0.0
        %1226 = vmatprep.subr.mxu0 0.0
        %1227 = vmatpush1.msra.mxu0 0.0
        %1228 = vmatprep.subr.mxu0 0.0
        %1229 = vmatpush1.msra.mxu0 0.0
        %1230 = vmatprep.subr.mxu0 0.0
        %1231 = vmatpush1.msra.mxu0 0.0
        %1232 = vmatprep.subr.mxu0 0.0
        %1233 = vmatpush1.msra.mxu0 0.0
        %1234 = vmatprep.subr.mxu0 0.0
        %1235 = vmatpush1.msra.mxu0 0.0
        %1236 = vmatprep.subr.mxu0 0.0
        %1237 = vmatpush1.msra.mxu0 0.0
        %1238 = vmatprep.subr.mxu0 0.0
        %1239 = vmatpush1.msra.mxu0 0.0
        %1240 = vmatprep.subr.mxu0 0.0
        %1241 = vmatpush1.msra.mxu0 0.0
        %1242 = vmatprep.subr.mxu0 0.0
        %1243 = vmatpush1.msra.mxu0 0.0
        %1244 = vmatprep.subr.mxu0 0.0
        %1245 = vmatpush1.msra.mxu0 0.0
        %1246 = vmatprep.subr.mxu0 0.0
        %1247 = vmatpush1.msra.mxu0 0.0
        %1248 = vmatprep.subr.mxu0 0.0
        %1249 = vmatpush1.msra.mxu0 0.0
        %1250 = vmatprep.subr.mxu0 0.0
        %1251 = vmatpush1.msra.mxu0 0.0
        %1252 = vmatprep.subr.mxu0 0.0
        %1253 = vmatpush1.msra.mxu0 0.0
        %1254 = vmatprep.subr.mxu0 0.0
        %1255 = vmatpush1.msra.mxu0 0.0
        %1256 = vmatprep.mubr.f32.mxu0 0.0
        %1257 = vmatmul.mubr.f32.gmra.mrb[0].mxu0 %v1181
        %v1258 = vpop.f32.mrb[0].mxu0
        %v1259 = vadd.f32 %v1163, %v1258
        %v1260 = vpop.f32.mrb[0].mxu0
        %1261 = vmatprep.mubr.f32.mxu0 0.0
        %1262 = vmatmul.mubr.f32.gmra.mrb[0].mxu0 %v1184
        %v1263 = vpop.f32.mrb[0].mxu0
        %v1264 = vadd.f32 %v1168, %v1263
        %v1265 = vpop.f32.mrb[0].mxu0
        %1266 = vmatprep.mubr.f32.mxu0 0.0
        %1267 = vmatmul.mubr.f32.gmra.mrb[0].mxu0 %v1187
        %v1268 = vpop.f32.mrb[0].mxu0
        %v1269 = vadd.f32 %v1173, %v1268
        %v1270 = vpop.f32.mrb[0].mxu0
        %1271 = vmatprep.mubr.f32.mxu0 0.0
        %1272 = vmatmul.mubr.f32.gmra.mrb[0].mxu0 %v1190
        %v1273 = vpop.f32.mrb[0].mxu0
        %v1274 = vadd.f32 %v1178, %v1273
        %v1275 = vpop.f32.mrb[0].mxu0
        %1276 = vdwg.mxu0
        %vm1277 = vcmp.gt.f32.partialorder %v1259, 0.0
        %vm1278 = vcmp.gt.f32.partialorder %v1264, 0.0
        %vm1279 = vcmp.gt.f32.partialorder %v1269, 0.0
        %vm1280 = vcmp.gt.f32.partialorder %v1274, 0.0
        %v1281 = vmul.f32 %v1259, 0.01
        %v1282 = vmul.f32 %v1264, 0.01
        %v1283 = vmul.f32 %v1269, 0.01
        %v1284 = vmul.f32 %v1274, 0.01
        %v1285 = vsel %vm1277, %v1259, %v1281
        %v1286 = vsel %vm1278, %v1264, %v1282
        %v1287 = vsel %vm1279, %v1269, %v1283
        %v1288 = vsel %vm1280, %v1274, %v1284
        %s1289 = scalar_lea.vmem %s3, 192
        %v1290 = vld [vmem:[%s1289] sm:$0xff]
        %v1291 = vld [vmem:[%s1289 + $0x8] sm:$0xff]
        %v1292 = vld [vmem:[%s1289 + $0x10] sm:$0xff]
        %v1293 = vld [vmem:[%s1289 + $0x18] sm:$0xff]
        %s1294 = scalar_lea.vmem %s4, 192
        %v1295 = vld [vmem:[%s1294] sm:$0xff]
        %v1296 = vld [vmem:[%s1294 + $0x8] sm:$0xff]
        %v1297 = vld [vmem:[%s1294 + $0x10] sm:$0xff]
        %v1298 = vld [vmem:[%s1294 + $0x18] sm:$0xff]
        %1300 = vset.pattern.permute.xlu0 0
        %1301 = vperm.xlu0 %1300, %v1295
        %v1302 = vpop.permute.xlu0 %1301
        %1305 = vset.pattern.permute.xlu0 0
        %1306 = vperm.xlu0 %1305, %v1296
        %v1307 = vpop.permute.xlu0 %1306
        %1310 = vset.pattern.permute.xlu0 0
        %1311 = vperm.xlu0 %1310, %v1297
        %v1312 = vpop.permute.xlu0 %1311
        %1315 = vset.pattern.permute.xlu0 0
        %1316 = vperm.xlu0 %1315, %v1298
        %v1317 = vpop.permute.xlu0 %1316
        %v1320 = vsel %vm484, %v1290, 0
        %v1323 = vsel %vm484, %v1291, 0
        %v1326 = vsel %vm484, %v1292, 0
        %v1329 = vsel %vm484, %v1293, 0
        %1331 = vmatprep.subr.mxu0 0.0
        %1332 = vmatpush1.msra.mxu0 %v1285
        %1333 = vmatprep.subr.mxu0 0.0
        %1334 = vmatpush1.msra.mxu0 %v1286
        %1335 = vmatprep.subr.mxu0 0.0
        %1336 = vmatpush1.msra.mxu0 %v1287
        %1337 = vmatprep.subr.mxu0 0.0
        %1338 = vmatpush1.msra.mxu0 %v1288
        %1339 = vmatprep.subr.mxu0 0.0
        %1340 = vmatpush1.msra.mxu0 0.0
        %1341 = vmatprep.subr.mxu0 0.0
        %1342 = vmatpush1.msra.mxu0 0.0
        %1343 = vmatprep.subr.mxu0 0.0
        %1344 = vmatpush1.msra.mxu0 0.0
        %1345 = vmatprep.subr.mxu0 0.0
        %1346 = vmatpush1.msra.mxu0 0.0
        %1347 = vmatprep.subr.mxu0 0.0
        %1348 = vmatpush1.msra.mxu0 0.0
        %1349 = vmatprep.subr.mxu0 0.0
        %1350 = vmatpush1.msra.mxu0 0.0
        %1351 = vmatprep.subr.mxu0 0.0
        %1352 = vmatpush1.msra.mxu0 0.0
        %1353 = vmatprep.subr.mxu0 0.0
        %1354 = vmatpush1.msra.mxu0 0.0
        %1355 = vmatprep.subr.mxu0 0.0
        %1356 = vmatpush1.msra.mxu0 0.0
        %1357 = vmatprep.subr.mxu0 0.0
        %1358 = vmatpush1.msra.mxu0 0.0
        %1359 = vmatprep.subr.mxu0 0.0
        %1360 = vmatpush1.msra.mxu0 0.0
        %1361 = vmatprep.subr.mxu0 0.0
        %1362 = vmatpush1.msra.mxu0 0.0
        %1363 = vmatprep.subr.mxu0 0.0
        %1364 = vmatpush1.msra.mxu0 0.0
        %1365 = vmatprep.subr.mxu0 0.0
        %1366 = vmatpush1.msra.mxu0 0.0
        %1367 = vmatprep.subr.mxu0 0.0
        %1368 = vmatpush1.msra.mxu0 0.0
        %1369 = vmatprep.subr.mxu0 0.0
        %1370 = vmatpush1.msra.mxu0 0.0
        %1371 = vmatprep.subr.mxu0 0.0
        %1372 = vmatpush1.msra.mxu0 0.0
        %1373 = vmatprep.subr.mxu0 0.0
        %1374 = vmatpush1.msra.mxu0 0.0
        %1375 = vmatprep.subr.mxu0 0.0
        %1376 = vmatpush1.msra.mxu0 0.0
        %1377 = vmatprep.subr.mxu0 0.0
        %1378 = vmatpush1.msra.mxu0 0.0
        %1379 = vmatprep.subr.mxu0 0.0
        %1380 = vmatpush1.msra.mxu0 0.0
        %1381 = vmatprep.subr.mxu0 0.0
        %1382 = vmatpush1.msra.mxu0 0.0
        %1383 = vmatprep.subr.mxu0 0.0
        %1384 = vmatpush1.msra.mxu0 0.0
        %1385 = vmatprep.subr.mxu0 0.0
        %1386 = vmatpush1.msra.mxu0 0.0
        %1387 = vmatprep.subr.mxu0 0.0
        %1388 = vmatpush1.msra.mxu0 0.0
        %1389 = vmatprep.subr.mxu0 0.0
        %1390 = vmatpush1.msra.mxu0 0.0
        %1391 = vmatprep.subr.mxu0 0.0
        %1392 = vmatpush1.msra.mxu0 0.0
        %1393 = vmatprep.subr.mxu0 0.0
        %1394 = vmatpush1.msra.mxu0 0.0
        %1395 = vmatprep.mubr.f32.mxu0 0.0
        %1396 = vmatmul.mubr.f32.gmra.mrb[0].mxu0 %v1320
        %v1397 = vpop.f32.mrb[0].mxu0
        %v1398 = vadd.f32 %v1302, %v1397
        %v1399 = vpop.f32.mrb[0].mxu0
        %1400 = vmatprep.mubr.f32.mxu0 0.0
        %1401 = vmatmul.mubr.f32.gmra.mrb[0].mxu0 %v1323
        %v1402 = vpop.f32.mrb[0].mxu0
        %v1403 = vadd.f32 %v1307, %v1402
        %v1404 = vpop.f32.mrb[0].mxu0
        %1405 = vmatprep.mubr.f32.mxu0 0.0
        %1406 = vmatmul.mubr.f32.gmra.mrb[0].mxu0 %v1326
        %v1407 = vpop.f32.mrb[0].mxu0
        %v1408 = vadd.f32 %v1312, %v1407
        %v1409 = vpop.f32.mrb[0].mxu0
        %1410 = vmatprep.mubr.f32.mxu0 0.0
        %1411 = vmatmul.mubr.f32.gmra.mrb[0].mxu0 %v1329
        %v1412 = vpop.f32.mrb[0].mxu0
        %v1413 = vadd.f32 %v1317, %v1412
        %v1414 = vpop.f32.mrb[0].mxu0
        %1415 = vdwg.mxu0
        %vm1416 = vcmp.gt.f32.partialorder %v1398, 0.0
        %vm1417 = vcmp.gt.f32.partialorder %v1403, 0.0
        %vm1418 = vcmp.gt.f32.partialorder %v1408, 0.0
        %vm1419 = vcmp.gt.f32.partialorder %v1413, 0.0
        %v1420 = vmul.f32 %v1398, 0.01
        %v1421 = vmul.f32 %v1403, 0.01
        %v1422 = vmul.f32 %v1408, 0.01
        %v1423 = vmul.f32 %v1413, 0.01
        %v1424 = vsel %vm1416, %v1398, %v1420
        %v1425 = vsel %vm1417, %v1403, %v1421
        %v1426 = vsel %vm1418, %v1408, %v1422
        %v1427 = vsel %vm1419, %v1413, %v1423
        %v1428 = vld [vmem:[%s5] sm:$0x1]
        %v1429 = vld [vmem:[#allocation2] sm:$0x1]
        %1431 = vset.pattern.permute.xlu0 0
        %1432 = vperm.xlu0 %1431, %v1429
        %v1433 = vpop.permute.xlu0 %1432
        %v1435 = vlaneseq
        %v1436 = vshrl.u32 %v1435, 7
        %v1437 = vsub.s32 0, %v1436
        %v1438 = vrot.slane %v1433, %v1437
        %v1440 = vsel %vm484, %v1428, 0
        %1442 = vmatprep.subr.mxu0 0.0
        %1443 = vmatpush1.msra.mxu0 %v1424
        %1444 = vmatprep.subr.mxu0 0.0
        %1445 = vmatpush1.msra.mxu0 %v1425
        %1446 = vmatprep.subr.mxu0 0.0
        %1447 = vmatpush1.msra.mxu0 %v1426
        %1448 = vmatprep.subr.mxu0 0.0
        %1449 = vmatpush1.msra.mxu0 %v1427
        %1450 = vmatprep.subr.mxu0 0.0
        %1451 = vmatpush1.msra.mxu0 0.0
        %1452 = vmatprep.subr.mxu0 0.0
        %1453 = vmatpush1.msra.mxu0 0.0
        %1454 = vmatprep.subr.mxu0 0.0
        %1455 = vmatpush1.msra.mxu0 0.0
        %1456 = vmatprep.subr.mxu0 0.0
        %1457 = vmatpush1.msra.mxu0 0.0
        %1458 = vmatprep.subr.mxu0 0.0
        %1459 = vmatpush1.msra.mxu0 0.0
        %1460 = vmatprep.subr.mxu0 0.0
        %1461 = vmatpush1.msra.mxu0 0.0
        %1462 = vmatprep.subr.mxu0 0.0
        %1463 = vmatpush1.msra.mxu0 0.0
        %1464 = vmatprep.subr.mxu0 0.0
        %1465 = vmatpush1.msra.mxu0 0.0
        %1466 = vmatprep.subr.mxu0 0.0
        %1467 = vmatpush1.msra.mxu0 0.0
        %1468 = vmatprep.subr.mxu0 0.0
        %1469 = vmatpush1.msra.mxu0 0.0
        %1470 = vmatprep.subr.mxu0 0.0
        %1471 = vmatpush1.msra.mxu0 0.0
        %1472 = vmatprep.subr.mxu0 0.0
        %1473 = vmatpush1.msra.mxu0 0.0
        %1474 = vmatprep.subr.mxu0 0.0
        %1475 = vmatpush1.msra.mxu0 0.0
        %1476 = vmatprep.subr.mxu0 0.0
        %1477 = vmatpush1.msra.mxu0 0.0
        %1478 = vmatprep.subr.mxu0 0.0
        %1479 = vmatpush1.msra.mxu0 0.0
        %1480 = vmatprep.subr.mxu0 0.0
        %1481 = vmatpush1.msra.mxu0 0.0
        %1482 = vmatprep.subr.mxu0 0.0
        %1483 = vmatpush1.msra.mxu0 0.0
        %1484 = vmatprep.subr.mxu0 0.0
        %1485 = vmatpush1.msra.mxu0 0.0
        %1486 = vmatprep.subr.mxu0 0.0
        %1487 = vmatpush1.msra.mxu0 0.0
        %1488 = vmatprep.subr.mxu0 0.0
        %1489 = vmatpush1.msra.mxu0 0.0
        %1490 = vmatprep.subr.mxu0 0.0
        %1491 = vmatpush1.msra.mxu0 0.0
        %1492 = vmatprep.subr.mxu0 0.0
        %1493 = vmatpush1.msra.mxu0 0.0
        %1494 = vmatprep.subr.mxu0 0.0
        %1495 = vmatpush1.msra.mxu0 0.0
        %1496 = vmatprep.subr.mxu0 0.0
        %1497 = vmatpush1.msra.mxu0 0.0
        %1498 = vmatprep.subr.mxu0 0.0
        %1499 = vmatpush1.msra.mxu0 0.0
        %1500 = vmatprep.subr.mxu0 0.0
        %1501 = vmatpush1.msra.mxu0 0.0
        %1502 = vmatprep.subr.mxu0 0.0
        %1503 = vmatpush1.msra.mxu0 0.0
        %1504 = vmatprep.subr.mxu0 0.0
        %1505 = vmatpush1.msra.mxu0 0.0
        %1506 = vmatprep.mubr.f32.mxu0 0.0
        %1507 = vmatmul.mubr.f32.gmra.mrb[0].mxu0 %v1440
        %v1508 = vpop.f32.mrb[0].mxu0
        %v1509 = vadd.f32 %v1438, %v1508
        %v1510 = vpop.f32.mrb[0].mxu0
        %1511 = vdwg.mxu0
        %1512 = vst [vmem:[%s315] sm:$0x1] %v1509
        %s1513 = sand.u32 %s183, 1
        %s1514 = scalar_lea.sflag [#allocation5], %s1513
        %s1515 = sand.u32 %s183, 1
        %s1516 = scalar_lea.vmem [#allocation4], %s1515
        // Predicated region
        $region87: #{tpu_custom_call.1} parent=81 // pred_check
          %p1517 = pneg %p193
        $region88: #{tpu_custom_call.1} parent=81 // pred_check_branch
          %1519 = sbr.rel (%p1517) target = $region90
        $region89: #{tpu_custom_call.1} parent=81 // pred_region
          %s1521 = ssub.s32 16, 16
          %1522 = vsyncadd %s1514, %s1521
          %s1523 = smul.addr %s23, 16
          %s1524 = scalar_lea.hbm %s7, %s1523
          %s1526 = sshll.u32 %s1516, 4
          %s1527 = int_to_ptr.vmem [resolvable:$true] %s1526
          %1529 = dma.vmem_to_hbm [thread:$0]  %s1527, 16, %s1524, %s1514
        $region90: #{tpu_custom_call.1} parent=81 // pred_fallthru
          _
      $region82: #{tpu_custom_call.1} parent=5 // pred_fallthru
        _
      %p1530 = scmp.le.s32.totalorder 2, %s18
      // Predicated region
      $region91: #{tpu_custom_call.1} parent=5 // pred_check
        %p1531 = pneg %p1530
      $region92: #{tpu_custom_call.1} parent=5 // pred_check_branch
        %1533 = sbr.rel (%p1531) target = $region94
      $region93: #{tpu_custom_call.1} parent=5 // pred_region
        %s1534 = ssub.s32 %s18, 2
        // Predicated region
        $region95: #{tpu_custom_call.1} parent=93 // pred_check
          %p1535 = pneg %p199
        $region96: #{tpu_custom_call.1} parent=93 // pred_check_branch
          %1537 = sbr.rel (%p1535) target = $region98
        $region97: #{tpu_custom_call.1} parent=93 // pred_region
          %s1538 = sand.u32 %s184, 1
          %s1539 = scalar_lea.sflag [#allocation5], %s1538
          %s1540 = sand.u32 %s184, 1
          %s1541 = scalar_lea.vmem [#allocation4], %s1540
          %1542 = dma.done %s1539, 16
        $region98: #{tpu_custom_call.1} parent=93 // pred_fallthru
          _
      $region94: #{tpu_custom_call.1} parent=5 // pred_fallthru
        _
    $region6: #{tpu_custom_call.1} parent=1 // loop_footer
      %s22 = sadd.s32 1, %s18
    $region7: #{tpu_custom_call.1} parent=1 // loop_footer_branch
      %17 = sbr.rel target = $region3
    $region8: #{tpu_custom_call.1} parent=1 // loop_exit
      _
    %1543 = vsyncpa [#allocation5], 1
    %s1544 = scalar_lea.sflag [#allocation5], 1
    %1545 = vsyncpa %s1544, 1

</llo_original>
